<compile_context>
chip_gen: v6e
topology: v6e:2x2x1
jax: 0.10.0
libtpu: 0.0.40
codegen_flags: <defaults>
</compile_context>

<pallas_src>
import functools

import jax
import jax.numpy as jnp
from jax.experimental import pallas as pl
from jax.experimental.pallas import tpu as pltpu


SLOPE = 0.02
IMG_CHANNELS = 3
IMAGE_SIZE = 256        # 8 stride-2 downsamplings must reach 1x1
N_BASE = 8              # scaled down from 64 to keep the synthetic test small
ROW_TILE = 1024         # target output rows per kernel tile
BN_EPS = 1e-5


# ----------------------------------------------------------------------------
# Pallas kernels
# ----------------------------------------------------------------------------
def _conv_down_kernel(q_ref, w_ref, o_ref, *, th, wd, cin, act, slope):
    """Fused 4x4/s2/p1 conv: 16 shifted (M,Cin)x(Cin,Cout) bf16 matmuls, f32 acc.

    q_ref : (4, Ho+1, Wo+1, Cin)  parity quadrants of the padded input (bf16)
    w_ref : (16, Cin, Cout)       taps ordered (kh*4 + kw)                (bf16)
    o_ref : (th*Wo, Cout)         output rows for this (batch, row-tile)  (f32)
    """
    r0 = pl.program_id(1) * th
    cout = o_ref.shape[-1]
    acc = jnp.zeros((th * wd, cout), jnp.float32)
    for di in range(4):
        for dj in range(4):
            qi = (di % 2) * 2 + (dj % 2)
            tap = q_ref[qi, pl.ds(r0 + di // 2, th), pl.ds(dj // 2, wd), :]
            acc = acc + jnp.dot(tap.reshape(th * wd, cin),
                                w_ref[di * 4 + dj],
                                preferred_element_type=jnp.float32)
    if act == "lrelu":
        acc = jnp.where(acc > 0, acc, slope * acc)
    o_ref[...] = acc


def _conv_up_kernel(x_ref, w_ref, bias_ref, o_ref, *, th, wd, cin, cout,
                    act, slope):
    """Fused sub-pixel ConvTranspose(4,2,1): per output row-phase, both column
    phases, 4 taps each -- no zero-tap work.

    x_ref    : (1, H+2, W+2, Cin)   padded input (bf16)
    w_ref    : (1, 8, Cin, Cout)    taps for this row-phase, order (px, a, b)
    bias_ref : (1, Cout)            output bias (zeros when absent)
    o_ref    : (th, 1, W, 2*Cout)   interleave-ready output block (f32)
    """
    py = pl.program_id(1)
    r0 = pl.program_id(2) * th
    phases = []
    for px in range(2):
        acc = jnp.zeros((th * wd, cout), jnp.float32)
        for a in range(2):
            for b in range(2):
                tap = x_ref[0, pl.ds(r0 + py + a, th), pl.ds(px + b, wd), :]
                acc = acc + jnp.dot(tap.reshape(th * wd, cin),
                                    w_ref[0, px * 4 + a * 2 + b],
                                    preferred_element_type=jnp.float32)
        acc = acc + bias_ref[...]
        if act == "lrelu":
            acc = jnp.where(acc > 0, acc, slope * acc)
        elif act == "tanh":
            acc = jnp.tanh(acc)
        phases.append(acc.reshape(th, wd, cout))
    o_ref[:, 0] = jnp.concatenate(phases, axis=-1)


def _matmul_act_kernel(a_ref, b_ref, bias_ref, o_ref, *, act, slope):
    """Row-tiled bf16 matmul with fused bias + activation (small-layer path)."""
    y = jnp.dot(a_ref[...], b_ref[...], preferred_element_type=jnp.float32)
    y = y + bias_ref[...]
    if act == "lrelu":
        y = jnp.where(y > 0, y, slope * y)
    elif act == "tanh":
        y = jnp.tanh(y)
    o_ref[...] = y


def _bn_stats_kernel(x_ref, o_ref):
    """Pass 1: accumulate per-channel sum / sumsq over an M-tiled grid."""
    @pl.when(pl.program_id(0) == 0)
    def _init():
        o_ref[...] = jnp.zeros_like(o_ref)

    x = x_ref[...]
    o_ref[...] += jnp.concatenate(
        [jnp.sum(x, axis=0, keepdims=True),
         jnp.sum(x * x, axis=0, keepdims=True)], axis=0)


def _affine_lrelu_kernel(x_ref, s_ref, t_ref, o_ref, *, slope):
    """Pass 2: y = x*scale + shift, then LeakyReLU (M-tiled, parallel)."""
    y = x_ref[...] * s_ref[...] + t_ref[...]
    o_ref[...] = jnp.where(y > 0, y, slope * y)


# ----------------------------------------------------------------------------
# Pallas wrappers
# ----------------------------------------------------------------------------
def fused_conv_down(x_nhwc, w_oihw, act, slope):
    """nn.Conv2d(Cin, Cout, 4, 2, 1, bias=False) without HBM im2col."""
    N, H, W, Cin = x_nhwc.shape
    Cout = w_oihw.shape[0]
    Ho, Wo = H // 2, W // 2
    xp = jnp.pad(x_nhwc, ((0, 0), (1, 1), (1, 1), (0, 0))).astype(jnp.bfloat16)
    # Parity quadrants: quad[a*2+b][i, j] = xp[2i+a, 2j+b]  -> (N*4, Ho+1, Wo+1, Cin)
    quad = jnp.stack([xp[:, a::2, b::2, :] for a in (0, 1) for b in (0, 1)],
                     axis=1).reshape(N * 4, Ho + 1, Wo + 1, Cin)
    wmat = jnp.transpose(w_oihw, (2, 3, 1, 0)).reshape(
        16, Cin, Cout).astype(jnp.bfloat16)

    th = min(Ho, max(1, ROW_TILE // Wo))
    rt = Ho // th
    kernel = functools.partial(_conv_down_kernel, th=th, wd=Wo, cin=Cin,
                               act=act, slope=slope)
    y = pl.pallas_call(
        kernel,
        out_shape=jax.ShapeDtypeStruct((N * Ho * Wo, Cout), jnp.float32),
        grid=(N, rt),
        in_specs=[
            pl.BlockSpec((4, Ho + 1, Wo + 1, Cin), lambda n, i: (n, 0, 0, 0)),
            pl.BlockSpec((16, Cin, Cout), lambda n, i: (0, 0, 0)),
        ],
        out_specs=pl.BlockSpec((th * Wo, Cout), lambda n, i: (n * rt + i, 0)),
        compiler_params=pltpu.CompilerParams(
            dimension_semantics=("parallel", "parallel")),
    )(quad, wmat)
    return y.reshape(N, Ho, Wo, Cout)


def fused_conv_up(x_nhwc, w_iohw, act, slope, bias=None):
    """nn.ConvTranspose2d(Cin, Cout, 4, 2, 1) via sub-pixel phase decomposition."""
    N, H, W, Cin = x_nhwc.shape
    Cout = w_iohw.shape[1]
    xp = jnp.pad(x_nhwc, ((0, 0), (1, 1), (1, 1), (0, 0))).astype(jnp.bfloat16)

    wt = jnp.transpose(w_iohw, (2, 3, 0, 1))          # (kh, kw, Cin, Cout)
    rows = []
    for py in range(2):
        taps = [wt[3 - py - 2 * a, 3 - px - 2 * b]
                for px in range(2) for a in range(2) for b in range(2)]
        rows.append(jnp.stack(taps, axis=0))          # (8, Cin, Cout)
    wph = jnp.stack(rows, axis=0).astype(jnp.bfloat16)  # (2, 8, Cin, Cout)

    bvec = (jnp.zeros((Cout,), jnp.float32) if bias is None
            else bias).reshape(1, Cout).astype(jnp.float32)

    th = min(H, max(1, ROW_TILE // W))
    rt = H // th
    kernel = functools.partial(_conv_up_kernel, th=th, wd=W, cin=Cin,
                               cout=Cout, act=act, slope=slope)
    y = pl.pallas_call(
        kernel,
        out_shape=jax.ShapeDtypeStruct((N * H, 2, W, 2 * Cout), jnp.float32),
        grid=(N, 2, rt),
        in_specs=[
            pl.BlockSpec((1, H + 2, W + 2, Cin), lambda n, p, i: (n, 0, 0, 0)),
            pl.BlockSpec((1, 8, Cin, Cout), lambda n, p, i: (p, 0, 0, 0)),
            pl.BlockSpec((1, Cout), lambda n, p, i: (0, 0)),
        ],
        out_specs=pl.BlockSpec((th, 1, W, 2 * Cout),
                               lambda n, p, i: (n * rt + i, p, 0, 0)),
        compiler_params=pltpu.CompilerParams(
            dimension_semantics=("parallel", "parallel", "parallel")),
    )(xp, wph, bvec)
    # (N*H, py, W, px*Cout) row-major == (N, 2H, 2W, Cout): free reshape.
    return y.reshape(N, 2 * H, 2 * W, Cout)


def tiled_matmul_act(a_bf16, b_bf16, bias, act, slope, tm=ROW_TILE):
    """(M, K) @ (K, Cout) with fused bias + activation, tiled over M."""
    M, K = a_bf16.shape
    Cout = b_bf16.shape[1]
    tm = min(M, tm)
    kernel = functools.partial(_matmul_act_kernel, act=act, slope=slope)
    return pl.pallas_call(
        kernel,
        out_shape=jax.ShapeDtypeStruct((M, Cout), jnp.float32),
        grid=(M // tm,),
        in_specs=[
            pl.BlockSpec((tm, K), lambda i: (i, 0)),
            pl.BlockSpec((K, Cout), lambda i: (0, 0)),
            pl.BlockSpec((1, Cout), lambda i: (0, 0)),
        ],
        out_specs=pl.BlockSpec((tm, Cout), lambda i: (i, 0)),
        compiler_params=pltpu.CompilerParams(
            dimension_semantics=("parallel",)),
    )(a_bf16, b_bf16, bias)


def batchnorm_lrelu(x2d, gamma, beta, slope, eps=BN_EPS):
    """Training-mode BatchNorm (batch stats, biased var) + LeakyReLU, tiled."""
    M, C = x2d.shape
    tm = min(M, ROW_TILE)

    stats = pl.pallas_call(
        _bn_stats_kernel,
        out_shape=jax.ShapeDtypeStruct((2, C), jnp.float32),
        grid=(M // tm,),
        in_specs=[pl.BlockSpec((tm, C), lambda i: (i, 0))],
        out_specs=pl.BlockSpec((2, C), lambda i: (0, 0)),
        compiler_params=pltpu.CompilerParams(
            dimension_semantics=("arbitrary",)),
    )(x2d)

    mean = stats[0] / M
    var = jnp.maximum(stats[1] / M - mean * mean, 0.0)
    scale = gamma * jax.lax.rsqrt(var + eps)
    shift = beta - mean * scale

    return pl.pallas_call(
        functools.partial(_affine_lrelu_kernel, slope=slope),
        out_shape=jax.ShapeDtypeStruct((M, C), jnp.float32),
        grid=(M // tm,),
        in_specs=[
            pl.BlockSpec((tm, C), lambda i: (i, 0)),
            pl.BlockSpec((1, C), lambda i: (0, 0)),
            pl.BlockSpec((1, C), lambda i: (0, 0)),
        ],
        out_specs=pl.BlockSpec((tm, C), lambda i: (i, 0)),
        compiler_params=pltpu.CompilerParams(
            dimension_semantics=("parallel",)),
    )(x2d, scale.reshape(1, C), shift.reshape(1, C))


# ----------------------------------------------------------------------------
# Small-layer fallback path (im2col; only used where tensors are a few KB)
# ----------------------------------------------------------------------------
def _extract_patches(x_nhwc, k, stride, pad):
    N, H, W, C = x_nhwc.shape
    xp = jnp.pad(x_nhwc, ((0, 0), (pad, pad), (pad, pad), (0, 0)))
    Ho = (H + 2 * pad - k) // stride + 1
    Wo = (W + 2 * pad - k) // stride + 1
    pieces = []
    for di in range(k):
        for dj in range(k):
            pieces.append(xp[:, di:di + Ho * stride:stride,
                             dj:dj + Wo * stride:stride, :])
    p = jnp.stack(pieces, axis=-2)                     # (N, Ho, Wo, k*k, C)
    return p.reshape(N * Ho * Wo, k * k * C), Ho, Wo


def _dilate2(x_nhwc):
    N, H, W, C = x_nhwc.shape
    y = jnp.zeros((N, 2 * H - 1, 2 * W - 1, C), x_nhwc.dtype)
    return y.at[:, ::2, ::2, :].set(x_nhwc)


def im2col_conv_down(x, w_oihw, act, slope):
    N, _, _, Cin = x.shape
    Cout = w_oihw.shape[0]
    patches, Ho, Wo = _extract_patches(x.astype(jnp.bfloat16), 4, 2, 1)
    wmat = jnp.transpose(w_oihw, (2, 3, 1, 0)).reshape(
        16 * Cin, Cout).astype(jnp.bfloat16)
    bias = jnp.zeros((1, Cout), jnp.float32)
    y = tiled_matmul_act(patches, wmat, bias, act, slope)
    return y.reshape(N, Ho, Wo, Cout)


def im2col_conv_up(x, w_iohw, act, slope, bias=None):
    N, _, _, Cin = x.shape
    Cout = w_iohw.shape[1]
    xd = _dilate2(x.astype(jnp.bfloat16))
    w_flip = jnp.flip(w_iohw, axis=(2, 3))
    wmat = jnp.transpose(w_flip, (2, 3, 0, 1)).reshape(
        16 * Cin, Cout).astype(jnp.bfloat16)
    patches, Ho, Wo = _extract_patches(xd, 4, 1, 2)
    bvec = (jnp.zeros((Cout,), jnp.float32) if bias is None
            else bias).reshape(1, Cout).astype(jnp.float32)
    y = tiled_matmul_act(patches, wmat, bvec, act, slope)
    return y.reshape(N, Ho, Wo, Cout)


# ----------------------------------------------------------------------------
# Layer routers
# ----------------------------------------------------------------------------
def conv_down(x, w_oihw, act, slope):
    _, _, W, Cin = x.shape
    Wo = W // 2
    if Wo % 8 == 0 and Cin >= 8:
        return fused_conv_down(x, w_oihw, act, slope)
    return im2col_conv_down(x, w_oihw, act, slope)


def conv_up(x, w_iohw, act, slope, bias=None):
    _, _, W, Cin = x.shape
    if W % 8 == 0 and Cin >= 8:
        return fused_conv_up(x, w_iohw, act, slope, bias)
    return im2col_conv_up(x, w_iohw, act, slope, bias)


# ----------------------------------------------------------------------------
# Model
# ----------------------------------------------------------------------------
def init_params(key, n=N_BASE, img_channels=IMG_CHANNELS):
    down_specs = [
        (img_channels, n, False),
        (n, 2 * n, True),
        (2 * n, 4 * n, True),
        (4 * n, 8 * n, True),
        (8 * n, 8 * n, True),
        (8 * n, 8 * n, True),
        (8 * n, 8 * n, True),
        (8 * n, 8 * n, False),
    ]
    up_specs = [
        (8 * n, 8 * n),
        (16 * n, 8 * n),
        (16 * n, 8 * n),
        (16 * n, 8 * n),
        (16 * n, 4 * n),
        (8 * n, 2 * n),
        (4 * n, n),
    ]
    keys = jax.random.split(key, len(down_specs) + len(up_specs) + 2)
    down = []
    for k_, (ci, co, norm) in zip(keys[:8], down_specs):
        down.append(dict(
            w=0.05 * jax.random.normal(k_, (co, ci, 4, 4), jnp.float32),
            gamma=jnp.ones((co,), jnp.float32),
            beta=jnp.zeros((co,), jnp.float32),
            norm=norm))
    up = []
    for k_, (ci, co) in zip(keys[8:15], up_specs):
        up.append(dict(
            w=0.05 * jax.random.normal(k_, (ci, co, 4, 4), jnp.float32),
            gamma=jnp.ones((co,), jnp.float32),
            beta=jnp.zeros((co,), jnp.float32)))
    w_out = 0.05 * jax.random.normal(keys[15], (2 * n, img_channels, 4, 4),
                                     jnp.float32)
    b_out = 0.01 * jax.random.normal(keys[16], (img_channels,), jnp.float32)
    return dict(down=down, up=up, w_out=w_out, b_out=b_out)


def forward(params, x_nchw):
    x = jnp.transpose(x_nchw.astype(jnp.float32), (0, 2, 3, 1))     # -> NHWC
    skips = []
    for layer in params["down"]:
        if layer["norm"]:
            y = conv_down(x, layer["w"], act="none", slope=SLOPE)
            n, h, w, c = y.shape
            y = batchnorm_lrelu(y.reshape(n * h * w, c), layer["gamma"],
                                layer["beta"], SLOPE).reshape(n, h, w, c)
        else:
            y = conv_down(x, layer["w"], act="lrelu", slope=SLOPE)
        x = y
        skips.append(x)

    skips = skips[::-1][1:]
    for layer, skip in zip(params["up"], skips):
        y = conv_up(x, layer["w"], act="none", slope=SLOPE)
        n, h, w, c = y.shape
        y = batchnorm_lrelu(y.reshape(n * h * w, c), layer["gamma"],
                            layer["beta"], SLOPE).reshape(n, h, w, c)
        x = jnp.concatenate([y, skip], axis=-1)        # channel concat (dim=1 NCHW)

    y = conv_up(x, params["w_out"], act="tanh", slope=SLOPE,
                bias=params["b_out"])
    return jnp.transpose(y, (0, 3, 1, 2))              # back to NCHW


# ----------------------------------------------------------------------------
def _self_check(key):
    """Fused kernels vs im2col fallback (identical bf16 products, f32 acc)."""
    k1, k2, k3, k4 = jax.random.split(key, 4)

    x = jax.random.normal(k1, (1, 16, 16, 8), jnp.float32)
    w = 0.05 * jax.random.normal(k2, (16, 8, 4, 4), jnp.float32)   # (Cout,Cin,4,4)
    a = fused_conv_down(x, w, "none", SLOPE)
    b = im2col_conv_down(x, w, "none", SLOPE)
    assert float(jnp.max(jnp.abs(a - b))) < 1e-3, "conv_down mismatch"

    xu = jax.random.normal(k3, (1, 8, 8, 16), jnp.float32)
    wu = 0.05 * jax.random.normal(k4, (16, 8, 4, 4), jnp.float32)  # (Cin,Cout,4,4)
    a = fused_conv_up(xu, wu, "none", SLOPE, None)
    b = im2col_conv_up(xu, wu, "none", SLOPE, None)
    assert float(jnp.max(jnp.abs(a - b))) < 1e-3, "conv_up mismatch"


if __name__ == "__main__":
    key = jax.random.PRNGKey(0)
    k_params, k_x, k_chk = jax.random.split(key, 3)
    params = init_params(k_params)

    _self_check(k_chk)

    # image_size must stay 256 so that 8 stride-2 downsamplings reach 1x1.
    x = jax.random.normal(k_x, (1, IMG_CHANNELS, IMAGE_SIZE, IMAGE_SIZE),
                          jnp.float32)

    fwd = jax.jit(lambda inp: forward(params, inp))
    out = jax.block_until_ready(fwd(x))

    assert out.shape == (1, IMG_CHANNELS, IMAGE_SIZE, IMAGE_SIZE), out.shape
    assert bool(jnp.all(jnp.isfinite(out)))
    assert bool(jnp.all(jnp.abs(out) <= 1.0))   # tanh range
    print("KERNEL_OK")
</pallas_src>

<mosaic_0001>
module attributes {stable_mosaic.version = 11 : i64} {
  func.func @_conv_down_kernel(%arg0: i32, %arg1: i32, %arg2: memref<4x9x9x8xbf16, #tpu.memory_space<vmem>>, %arg3: memref<16x8x16xbf16, #tpu.memory_space<vmem>>, %arg4: memref<64x16xf32, #tpu.memory_space<vmem>>) attributes {dimension_semantics = [#tpu.dimension_semantics<parallel>, #tpu.dimension_semantics<parallel>], iteration_bounds = array<i64: 1, 1>, scalar_prefetch = 0 : i64, scratch_operands = 0 : i64, tpu.core_type = #tpu.core_type<tc>, window_params = [{transform_indices = @transform_0, window_bounds = array<i64: 4, 9, 9, 8>}, {pipeline_mode = #tpu.pipeline_mode<synchronous>, transform_indices = @transform_1, window_bounds = array<i64: 16, 8, 16>}, {transform_indices = @transform_2, window_bounds = array<i64: 64, 16>}]} {
    %c8_i32 = arith.constant 8 : i32
    %0 = arith.muli %arg1, %c8_i32 : i32
    %cst = arith.constant 0.000000e+00 : f32
    %1 = vector.broadcast %cst : f32 to vector<64x16xf32>
    %c0_i32 = arith.constant 0 : i32
    %2 = arith.addi %0, %c0_i32 : i32
    %c0 = arith.constant 0 : index
    %3 = arith.index_cast %2 : i32 to index
    %c0_0 = arith.constant 0 : index
    %c0_1 = arith.constant 0 : index
    %4 = vector.load %arg2[%c0, %3, %c0_0, %c0_1] : memref<4x9x9x8xbf16, #tpu.memory_space<vmem>>, vector<1x8x8x8xbf16>
    %5 = vector.shape_cast %4 : vector<1x8x8x8xbf16> to vector<8x8x8xbf16>
    %6 = vector.shape_cast %5 : vector<8x8x8xbf16> to vector<64x8xbf16>
    %c0_2 = arith.constant 0 : index
    %c0_3 = arith.constant 0 : index
    %c0_4 = arith.constant 0 : index
    %7 = vector.load %arg3[%c0_2, %c0_3, %c0_4] : memref<16x8x16xbf16, #tpu.memory_space<vmem>>, vector<1x8x16xbf16>
    %8 = vector.shape_cast %7 : vector<1x8x16xbf16> to vector<8x16xbf16>
    %cst_5 = arith.constant dense<0.000000e+00> : vector<64x16xf32>
    %9 = tpu.matmul %6, %8, %cst_5 {dimension_numbers = #tpu.dot_dimension_numbers<[1], [0], [0], [1], [0, 0, 1, 1], [], []>} : vector<64x8xbf16>, vector<8x16xbf16>, vector<64x16xf32> -> vector<64x16xf32>
    %10 = arith.addf %1, %9 : vector<64x16xf32>
    %c0_i32_6 = arith.constant 0 : i32
    %11 = arith.addi %0, %c0_i32_6 : i32
    %c1 = arith.constant 1 : index
    %12 = arith.index_cast %11 : i32 to index
    %c0_7 = arith.constant 0 : index
    %c0_8 = arith.constant 0 : index
    %13 = vector.load %arg2[%c1, %12, %c0_7, %c0_8] : memref<4x9x9x8xbf16, #tpu.memory_space<vmem>>, vector<1x8x8x8xbf16>
    %14 = vector.shape_cast %13 : vector<1x8x8x8xbf16> to vector<8x8x8xbf16>
    %15 = vector.shape_cast %14 : vector<8x8x8xbf16> to vector<64x8xbf16>
    %c1_9 = arith.constant 1 : index
    %c0_10 = arith.constant 0 : index
    %c0_11 = arith.constant 0 : index
    %16 = vector.load %arg3[%c1_9, %c0_10, %c0_11] : memref<16x8x16xbf16, #tpu.memory_space<vmem>>, vector<1x8x16xbf16>
    %17 = vector.shape_cast %16 : vector<1x8x16xbf16> to vector<8x16xbf16>
    %cst_12 = arith.constant dense<0.000000e+00> : vector<64x16xf32>
    %18 = tpu.matmul %15, %17, %cst_12 {dimension_numbers = #tpu.dot_dimension_numbers<[1], [0], [0], [1], [0, 0, 1, 1], [], []>} : vector<64x8xbf16>, vector<8x16xbf16>, vector<64x16xf32> -> vector<64x16xf32>
    %19 = arith.addf %10, %18 : vector<64x16xf32>
    %c0_i32_13 = arith.constant 0 : i32
    %20 = arith.addi %0, %c0_i32_13 : i32
    %c0_14 = arith.constant 0 : index
    %21 = arith.index_cast %20 : i32 to index
    %c1_15 = arith.constant 1 : index
    %c0_16 = arith.constant 0 : index
    %22 = vector.load %arg2[%c0_14, %21, %c1_15, %c0_16] : memref<4x9x9x8xbf16, #tpu.memory_space<vmem>>, vector<1x8x8x8xbf16>
    %23 = vector.shape_cast %22 : vector<1x8x8x8xbf16> to vector<8x8x8xbf16>
    %24 = vector.shape_cast %23 : vector<8x8x8xbf16> to vector<64x8xbf16>
    %c2 = arith.constant 2 : index
    %c0_17 = arith.constant 0 : index
    %c0_18 = arith.constant 0 : index
    %25 = vector.load %arg3[%c2, %c0_17, %c0_18] : memref<16x8x16xbf16, #tpu.memory_space<vmem>>, vector<1x8x16xbf16>
    %26 = vector.shape_cast %25 : vector<1x8x16xbf16> to vector<8x16xbf16>
    %cst_19 = arith.constant dense<0.000000e+00> : vector<64x16xf32>
    %27 = tpu.matmul %24, %26, %cst_19 {dimension_numbers = #tpu.dot_dimension_numbers<[1], [0], [0], [1], [0, 0, 1, 1], [], []>} : vector<64x8xbf16>, vector<8x16xbf16>, vector<64x16xf32> -> vector<64x16xf32>
    %28 = arith.addf %19, %27 : vector<64x16xf32>
    %c0_i32_20 = arith.constant 0 : i32
    %29 = arith.addi %0, %c0_i32_20 : i32
    %c1_21 = arith.constant 1 : index
    %30 = arith.index_cast %29 : i32 to index
    %c1_22 = arith.constant 1 : index
    %c0_23 = arith.constant 0 : index
    %31 = vector.load %arg2[%c1_21, %30, %c1_22, %c0_23] : memref<4x9x9x8xbf16, #tpu.memory_space<vmem>>, vector<1x8x8x8xbf16>
    %32 = vector.shape_cast %31 : vector<1x8x8x8xbf16> to vector<8x8x8xbf16>
    %33 = vector.shape_cast %32 : vector<8x8x8xbf16> to vector<64x8xbf16>
    %c3 = arith.constant 3 : index
    %c0_24 = arith.constant 0 : index
    %c0_25 = arith.constant 0 : index
    %34 = vector.load %arg3[%c3, %c0_24, %c0_25] : memref<16x8x16xbf16, #tpu.memory_space<vmem>>, vector<1x8x16xbf16>
    %35 = vector.shape_cast %34 : vector<1x8x16xbf16> to vector<8x16xbf16>
    %cst_26 = arith.constant dense<0.000000e+00> : vector<64x16xf32>
    %36 = tpu.matmul %33, %35, %cst_26 {dimension_numbers = #tpu.dot_dimension_numbers<[1], [0], [0], [1], [0, 0, 1, 1], [], []>} : vector<64x8xbf16>, vector<8x16xbf16>, vector<64x16xf32> -> vector<64x16xf32>
    %37 = arith.addf %28, %36 : vector<64x16xf32>
    %c0_i32_27 = arith.constant 0 : i32
    %38 = arith.addi %0, %c0_i32_27 : i32
    %c2_28 = arith.constant 2 : index
    %39 = arith.index_cast %38 : i32 to index
    %c0_29 = arith.constant 0 : index
    %c0_30 = arith.constant 0 : index
    %40 = vector.load %arg2[%c2_28, %39, %c0_29, %c0_30] : memref<4x9x9x8xbf16, #tpu.memory_space<vmem>>, vector<1x8x8x8xbf16>
    %41 = vector.shape_cast %40 : vector<1x8x8x8xbf16> to vector<8x8x8xbf16>
    %42 = vector.shape_cast %41 : vector<8x8x8xbf16> to vector<64x8xbf16>
    %c4 = arith.constant 4 : index
    %c0_31 = arith.constant 0 : index
    %c0_32 = arith.constant 0 : index
    %43 = vector.load %arg3[%c4, %c0_31, %c0_32] : memref<16x8x16xbf16, #tpu.memory_space<vmem>>, vector<1x8x16xbf16>
    %44 = vector.shape_cast %43 : vector<1x8x16xbf16> to vector<8x16xbf16>
    %cst_33 = arith.constant dense<0.000000e+00> : vector<64x16xf32>
    %45 = tpu.matmul %42, %44, %cst_33 {dimension_numbers = #tpu.dot_dimension_numbers<[1], [0], [0], [1], [0, 0, 1, 1], [], []>} : vector<64x8xbf16>, vector<8x16xbf16>, vector<64x16xf32> -> vector<64x16xf32>
    %46 = arith.addf %37, %45 : vector<64x16xf32>
    %c0_i32_34 = arith.constant 0 : i32
    %47 = arith.addi %0, %c0_i32_34 : i32
    %c3_35 = arith.constant 3 : index
    %48 = arith.index_cast %47 : i32 to index
    %c0_36 = arith.constant 0 : index
    %c0_37 = arith.constant 0 : index
    %49 = vector.load %arg2[%c3_35, %48, %c0_36, %c0_37] : memref<4x9x9x8xbf16, #tpu.memory_space<vmem>>, vector<1x8x8x8xbf16>
    %50 = vector.shape_cast %49 : vector<1x8x8x8xbf16> to vector<8x8x8xbf16>
    %51 = vector.shape_cast %50 : vector<8x8x8xbf16> to vector<64x8xbf16>
    %c5 = arith.constant 5 : index
    %c0_38 = arith.constant 0 : index
    %c0_39 = arith.constant 0 : index
    %52 = vector.load %arg3[%c5, %c0_38, %c0_39] : memref<16x8x16xbf16, #tpu.memory_space<vmem>>, vector<1x8x16xbf16>
    %53 = vector.shape_cast %52 : vector<1x8x16xbf16> to vector<8x16xbf16>
    %cst_40 = arith.constant dense<0.000000e+00> : vector<64x16xf32>
    %54 = tpu.matmul %51, %53, %cst_40 {dimension_numbers = #tpu.dot_dimension_numbers<[1], [0], [0], [1], [0, 0, 1, 1], [], []>} : vector<64x8xbf16>, vector<8x16xbf16>, vector<64x16xf32> -> vector<64x16xf32>
    %55 = arith.addf %46, %54 : vector<64x16xf32>
    %c0_i32_41 = arith.constant 0 : i32
    %56 = arith.addi %0, %c0_i32_41 : i32
    %c2_42 = arith.constant 2 : index
    %57 = arith.index_cast %56 : i32 to index
    %c1_43 = arith.constant 1 : index
    %c0_44 = arith.constant 0 : index
    %58 = vector.load %arg2[%c2_42, %57, %c1_43, %c0_44] : memref<4x9x9x8xbf16, #tpu.memory_space<vmem>>, vector<1x8x8x8xbf16>
    %59 = vector.shape_cast %58 : vector<1x8x8x8xbf16> to vector<8x8x8xbf16>
    %60 = vector.shape_cast %59 : vector<8x8x8xbf16> to vector<64x8xbf16>
    %c6 = arith.constant 6 : index
    %c0_45 = arith.constant 0 : index
    %c0_46 = arith.constant 0 : index
    %61 = vector.load %arg3[%c6, %c0_45, %c0_46] : memref<16x8x16xbf16, #tpu.memory_space<vmem>>, vector<1x8x16xbf16>
    %62 = vector.shape_cast %61 : vector<1x8x16xbf16> to vector<8x16xbf16>
    %cst_47 = arith.constant dense<0.000000e+00> : vector<64x16xf32>
    %63 = tpu.matmul %60, %62, %cst_47 {dimension_numbers = #tpu.dot_dimension_numbers<[1], [0], [0], [1], [0, 0, 1, 1], [], []>} : vector<64x8xbf16>, vector<8x16xbf16>, vector<64x16xf32> -> vector<64x16xf32>
    %64 = arith.addf %55, %63 : vector<64x16xf32>
    %c0_i32_48 = arith.constant 0 : i32
    %65 = arith.addi %0, %c0_i32_48 : i32
    %c3_49 = arith.constant 3 : index
    %66 = arith.index_cast %65 : i32 to index
    %c1_50 = arith.constant 1 : index
    %c0_51 = arith.constant 0 : index
    %67 = vector.load %arg2[%c3_49, %66, %c1_50, %c0_51] : memref<4x9x9x8xbf16, #tpu.memory_space<vmem>>, vector<1x8x8x8xbf16>
    %68 = vector.shape_cast %67 : vector<1x8x8x8xbf16> to vector<8x8x8xbf16>
    %69 = vector.shape_cast %68 : vector<8x8x8xbf16> to vector<64x8xbf16>
    %c7 = arith.constant 7 : index
    %c0_52 = arith.constant 0 : index
    %c0_53 = arith.constant 0 : index
    %70 = vector.load %arg3[%c7, %c0_52, %c0_53] : memref<16x8x16xbf16, #tpu.memory_space<vmem>>, vector<1x8x16xbf16>
    %71 = vector.shape_cast %70 : vector<1x8x16xbf16> to vector<8x16xbf16>
    %cst_54 = arith.constant dense<0.000000e+00> : vector<64x16xf32>
    %72 = tpu.matmul %69, %71, %cst_54 {dimension_numbers = #tpu.dot_dimension_numbers<[1], [0], [0], [1], [0, 0, 1, 1], [], []>} : vector<64x8xbf16>, vector<8x16xbf16>, vector<64x16xf32> -> vector<64x16xf32>
    %73 = arith.addf %64, %72 : vector<64x16xf32>
    %c1_i32 = arith.constant 1 : i32
    %74 = arith.addi %0, %c1_i32 : i32
    %c0_55 = arith.constant 0 : index
    %75 = arith.index_cast %74 : i32 to index
    %c0_56 = arith.constant 0 : index
    %c0_57 = arith.constant 0 : index
    %76 = vector.load %arg2[%c0_55, %75, %c0_56, %c0_57] : memref<4x9x9x8xbf16, #tpu.memory_space<vmem>>, vector<1x8x8x8xbf16>
    %77 = vector.shape_cast %76 : vector<1x8x8x8xbf16> to vector<8x8x8xbf16>
    %78 = vector.shape_cast %77 : vector<8x8x8xbf16> to vector<64x8xbf16>
    %c8 = arith.constant 8 : index
    %c0_58 = arith.constant 0 : index
    %c0_59 = arith.constant 0 : index
    %79 = vector.load %arg3[%c8, %c0_58, %c0_59] : memref<16x8x16xbf16, #tpu.memory_space<vmem>>, vector<1x8x16xbf16>
    %80 = vector.shape_cast %79 : vector<1x8x16xbf16> to vector<8x16xbf16>
    %cst_60 = arith.constant dense<0.000000e+00> : vector<64x16xf32>
    %81 = tpu.matmul %78, %80, %cst_60 {dimension_numbers = #tpu.dot_dimension_numbers<[1], [0], [0], [1], [0, 0, 1, 1], [], []>} : vector<64x8xbf16>, vector<8x16xbf16>, vector<64x16xf32> -> vector<64x16xf32>
    %82 = arith.addf %73, %81 : vector<64x16xf32>
    %c1_i32_61 = arith.constant 1 : i32
    %83 = arith.addi %0, %c1_i32_61 : i32
    %c1_62 = arith.constant 1 : index
    %84 = arith.index_cast %83 : i32 to index
    %c0_63 = arith.constant 0 : index
    %c0_64 = arith.constant 0 : index
    %85 = vector.load %arg2[%c1_62, %84, %c0_63, %c0_64] : memref<4x9x9x8xbf16, #tpu.memory_space<vmem>>, vector<1x8x8x8xbf16>
    %86 = vector.shape_cast %85 : vector<1x8x8x8xbf16> to vector<8x8x8xbf16>
    %87 = vector.shape_cast %86 : vector<8x8x8xbf16> to vector<64x8xbf16>
    %c9 = arith.constant 9 : index
    %c0_65 = arith.constant 0 : index
    %c0_66 = arith.constant 0 : index
    %88 = vector.load %arg3[%c9, %c0_65, %c0_66] : memref<16x8x16xbf16, #tpu.memory_space<vmem>>, vector<1x8x16xbf16>
    %89 = vector.shape_cast %88 : vector<1x8x16xbf16> to vector<8x16xbf16>
    %cst_67 = arith.constant dense<0.000000e+00> : vector<64x16xf32>
    %90 = tpu.matmul %87, %89, %cst_67 {dimension_numbers = #tpu.dot_dimension_numbers<[1], [0], [0], [1], [0, 0, 1, 1], [], []>} : vector<64x8xbf16>, vector<8x16xbf16>, vector<64x16xf32> -> vector<64x16xf32>
    %91 = arith.addf %82, %90 : vector<64x16xf32>
    %c1_i32_68 = arith.constant 1 : i32
    %92 = arith.addi %0, %c1_i32_68 : i32
    %c0_69 = arith.constant 0 : index
    %93 = arith.index_cast %92 : i32 to index
    %c1_70 = arith.constant 1 : index
    %c0_71 = arith.constant 0 : index
    %94 = vector.load %arg2[%c0_69, %93, %c1_70, %c0_71] : memref<4x9x9x8xbf16, #tpu.memory_space<vmem>>, vector<1x8x8x8xbf16>
    %95 = vector.shape_cast %94 : vector<1x8x8x8xbf16> to vector<8x8x8xbf16>
    %96 = vector.shape_cast %95 : vector<8x8x8xbf16> to vector<64x8xbf16>
    %c10 = arith.constant 10 : index
    %c0_72 = arith.constant 0 : index
    %c0_73 = arith.constant 0 : index
    %97 = vector.load %arg3[%c10, %c0_72, %c0_73] : memref<16x8x16xbf16, #tpu.memory_space<vmem>>, vector<1x8x16xbf16>
    %98 = vector.shape_cast %97 : vector<1x8x16xbf16> to vector<8x16xbf16>
    %cst_74 = arith.constant dense<0.000000e+00> : vector<64x16xf32>
    %99 = tpu.matmul %96, %98, %cst_74 {dimension_numbers = #tpu.dot_dimension_numbers<[1], [0], [0], [1], [0, 0, 1, 1], [], []>} : vector<64x8xbf16>, vector<8x16xbf16>, vector<64x16xf32> -> vector<64x16xf32>
    %100 = arith.addf %91, %99 : vector<64x16xf32>
    %c1_i32_75 = arith.constant 1 : i32
    %101 = arith.addi %0, %c1_i32_75 : i32
    %c1_76 = arith.constant 1 : index
    %102 = arith.index_cast %101 : i32 to index
    %c1_77 = arith.constant 1 : index
    %c0_78 = arith.constant 0 : index
    %103 = vector.load %arg2[%c1_76, %102, %c1_77, %c0_78] : memref<4x9x9x8xbf16, #tpu.memory_space<vmem>>, vector<1x8x8x8xbf16>
    %104 = vector.shape_cast %103 : vector<1x8x8x8xbf16> to vector<8x8x8xbf16>
    %105 = vector.shape_cast %104 : vector<8x8x8xbf16> to vector<64x8xbf16>
    %c11 = arith.constant 11 : index
    %c0_79 = arith.constant 0 : index
    %c0_80 = arith.constant 0 : index
    %106 = vector.load %arg3[%c11, %c0_79, %c0_80] : memref<16x8x16xbf16, #tpu.memory_space<vmem>>, vector<1x8x16xbf16>
    %107 = vector.shape_cast %106 : vector<1x8x16xbf16> to vector<8x16xbf16>
    %cst_81 = arith.constant dense<0.000000e+00> : vector<64x16xf32>
    %108 = tpu.matmul %105, %107, %cst_81 {dimension_numbers = #tpu.dot_dimension_numbers<[1], [0], [0], [1], [0, 0, 1, 1], [], []>} : vector<64x8xbf16>, vector<8x16xbf16>, vector<64x16xf32> -> vector<64x16xf32>
    %109 = arith.addf %100, %108 : vector<64x16xf32>
    %c1_i32_82 = arith.constant 1 : i32
    %110 = arith.addi %0, %c1_i32_82 : i32
    %c2_83 = arith.constant 2 : index
    %111 = arith.index_cast %110 : i32 to index
    %c0_84 = arith.constant 0 : index
    %c0_85 = arith.constant 0 : index
    %112 = vector.load %arg2[%c2_83, %111, %c0_84, %c0_85] : memref<4x9x9x8xbf16, #tpu.memory_space<vmem>>, vector<1x8x8x8xbf16>
    %113 = vector.shape_cast %112 : vector<1x8x8x8xbf16> to vector<8x8x8xbf16>
    %114 = vector.shape_cast %113 : vector<8x8x8xbf16> to vector<64x8xbf16>
    %c12 = arith.constant 12 : index
    %c0_86 = arith.constant 0 : index
    %c0_87 = arith.constant 0 : index
    %115 = vector.load %arg3[%c12, %c0_86, %c0_87] : memref<16x8x16xbf16, #tpu.memory_space<vmem>>, vector<1x8x16xbf16>
    %116 = vector.shape_cast %115 : vector<1x8x16xbf16> to vector<8x16xbf16>
    %cst_88 = arith.constant dense<0.000000e+00> : vector<64x16xf32>
    %117 = tpu.matmul %114, %116, %cst_88 {dimension_numbers = #tpu.dot_dimension_numbers<[1], [0], [0], [1], [0, 0, 1, 1], [], []>} : vector<64x8xbf16>, vector<8x16xbf16>, vector<64x16xf32> -> vector<64x16xf32>
    %118 = arith.addf %109, %117 : vector<64x16xf32>
    %c1_i32_89 = arith.constant 1 : i32
    %119 = arith.addi %0, %c1_i32_89 : i32
    %c3_90 = arith.constant 3 : index
    %120 = arith.index_cast %119 : i32 to index
    %c0_91 = arith.constant 0 : index
    %c0_92 = arith.constant 0 : index
    %121 = vector.load %arg2[%c3_90, %120, %c0_91, %c0_92] : memref<4x9x9x8xbf16, #tpu.memory_space<vmem>>, vector<1x8x8x8xbf16>
    %122 = vector.shape_cast %121 : vector<1x8x8x8xbf16> to vector<8x8x8xbf16>
    %123 = vector.shape_cast %122 : vector<8x8x8xbf16> to vector<64x8xbf16>
    %c13 = arith.constant 13 : index
    %c0_93 = arith.constant 0 : index
    %c0_94 = arith.constant 0 : index
    %124 = vector.load %arg3[%c13, %c0_93, %c0_94] : memref<16x8x16xbf16, #tpu.memory_space<vmem>>, vector<1x8x16xbf16>
    %125 = vector.shape_cast %124 : vector<1x8x16xbf16> to vector<8x16xbf16>
    %cst_95 = arith.constant dense<0.000000e+00> : vector<64x16xf32>
    %126 = tpu.matmul %123, %125, %cst_95 {dimension_numbers = #tpu.dot_dimension_numbers<[1], [0], [0], [1], [0, 0, 1, 1], [], []>} : vector<64x8xbf16>, vector<8x16xbf16>, vector<64x16xf32> -> vector<64x16xf32>
    %127 = arith.addf %118, %126 : vector<64x16xf32>
    %c1_i32_96 = arith.constant 1 : i32
    %128 = arith.addi %0, %c1_i32_96 : i32
    %c2_97 = arith.constant 2 : index
    %129 = arith.index_cast %128 : i32 to index
    %c1_98 = arith.constant 1 : index
    %c0_99 = arith.constant 0 : index
    %130 = vector.load %arg2[%c2_97, %129, %c1_98, %c0_99] : memref<4x9x9x8xbf16, #tpu.memory_space<vmem>>, vector<1x8x8x8xbf16>
    %131 = vector.shape_cast %130 : vector<1x8x8x8xbf16> to vector<8x8x8xbf16>
    %132 = vector.shape_cast %131 : vector<8x8x8xbf16> to vector<64x8xbf16>
    %c14 = arith.constant 14 : index
    %c0_100 = arith.constant 0 : index
    %c0_101 = arith.constant 0 : index
    %133 = vector.load %arg3[%c14, %c0_100, %c0_101] : memref<16x8x16xbf16, #tpu.memory_space<vmem>>, vector<1x8x16xbf16>
    %134 = vector.shape_cast %133 : vector<1x8x16xbf16> to vector<8x16xbf16>
    %cst_102 = arith.constant dense<0.000000e+00> : vector<64x16xf32>
    %135 = tpu.matmul %132, %134, %cst_102 {dimension_numbers = #tpu.dot_dimension_numbers<[1], [0], [0], [1], [0, 0, 1, 1], [], []>} : vector<64x8xbf16>, vector<8x16xbf16>, vector<64x16xf32> -> vector<64x16xf32>
    %136 = arith.addf %127, %135 : vector<64x16xf32>
    %c1_i32_103 = arith.constant 1 : i32
    %137 = arith.addi %0, %c1_i32_103 : i32
    %c3_104 = arith.constant 3 : index
    %138 = arith.index_cast %137 : i32 to index
    %c1_105 = arith.constant 1 : index
    %c0_106 = arith.constant 0 : index
    %139 = vector.load %arg2[%c3_104, %138, %c1_105, %c0_106] : memref<4x9x9x8xbf16, #tpu.memory_space<vmem>>, vector<1x8x8x8xbf16>
    %140 = vector.shape_cast %139 : vector<1x8x8x8xbf16> to vector<8x8x8xbf16>
    %141 = vector.shape_cast %140 : vector<8x8x8xbf16> to vector<64x8xbf16>
    %c15 = arith.constant 15 : index
    %c0_107 = arith.constant 0 : index
    %c0_108 = arith.constant 0 : index
    %142 = vector.load %arg3[%c15, %c0_107, %c0_108] : memref<16x8x16xbf16, #tpu.memory_space<vmem>>, vector<1x8x16xbf16>
    %143 = vector.shape_cast %142 : vector<1x8x16xbf16> to vector<8x16xbf16>
    %cst_109 = arith.constant dense<0.000000e+00> : vector<64x16xf32>
    %144 = tpu.matmul %141, %143, %cst_109 {dimension_numbers = #tpu.dot_dimension_numbers<[1], [0], [0], [1], [0, 0, 1, 1], [], []>} : vector<64x8xbf16>, vector<8x16xbf16>, vector<64x16xf32> -> vector<64x16xf32>
    %145 = arith.addf %136, %144 : vector<64x16xf32>
    %c0_110 = arith.constant 0 : index
    %c0_111 = arith.constant 0 : index
    %146 = vector.load %arg4[%c0_110, %c0_111] : memref<64x16xf32, #tpu.memory_space<vmem>>, vector<64x16xf32>
    tpu.vector_store %arg4[%c0_110, %c0_111], %145 {strides = array<i32>} : memref<64x16xf32, #tpu.memory_space<vmem>>, vector<64x16xf32>,
    return
  }
  func.func @transform_0(%arg0: i32, %arg1: i32) -> (i32, i32, i32, i32) {
    %c0_i32 = arith.constant 0 : i32
    %c0_i32_0 = arith.constant 0 : i32
    %c0_i32_1 = arith.constant 0 : i32
    %c0_i32_2 = arith.constant 0 : i32
    return %arg0, %c0_i32, %c0_i32_0, %c0_i32_1 : i32, i32, i32, i32
  }
  func.func @transform_1(%arg0: i32, %arg1: i32) -> (i32, i32, i32) {
    %c0_i32 = arith.constant 0 : i32
    %c0_i32_0 = arith.constant 0 : i32
    %c0_i32_1 = arith.constant 0 : i32
    %c0_i32_2 = arith.constant 0 : i32
    return %c0_i32, %c0_i32_0, %c0_i32_1 : i32, i32, i32
  }
  func.func @transform_2(%arg0: i32, %arg1: i32) -> (i32, i32) {
    %c1_i32 = arith.constant 1 : i32
    %0 = arith.muli %arg0, %c1_i32 : i32
    %1 = arith.addi %0, %arg1 : i32
    %c0_i32 = arith.constant 0 : i32
    %c0_i32_0 = arith.constant 0 : i32
    return %1, %c0_i32 : i32, i32
  }
}

</mosaic_0001>

<llo_original>
// kernel: tpu_custom_call.1
$region0: #{tpu_custom_call.1}
  #allocation0 [shape = 'u32[]', space=smem, size = 0x4, offset = 0x4, fixed_abs, tag = 'smem constant byte address 0x4 - core index']
  #allocation1 [shape = 'u32[144,128]{1,0:T(1,128)}', space=vmem, size = 0x12000, scoped, tag = 'internal scratch']
  %s0 = inlined_call_operand.vmem [shape: bf16[4,9,9,8], index: 0, kind: input, shape index: {}]
  %s1 = inlined_call_operand.vmem [shape: bf16[16,8,16], index: 1, kind: input, shape index: {}]
  %s2 = inlined_call_operand.vmem [shape: f32[64,16], index: 2, kind: output, shape index: {}]
  %s3 = sld [smem:[#allocation0]]
  $region18: #{tpu_custom_call.1} parent=0
    _
  %s5 = ssub.s32 1, %s3
  %s6 = scalar_select 0, %s5, %s3
  // Predicated region
  $region2: #{tpu_custom_call.1} parent=0 // pred_check
    _
  $region3: #{tpu_custom_call.1} parent=0 // pred_check_branch
    %8 = sbr.rel (0) target = $region5
  $region4: #{tpu_custom_call.1} parent=0 // pred_region
    _
  $region5: #{tpu_custom_call.1} parent=0 // pred_fallthru
    _
  // Predicated region
  $region6: #{tpu_custom_call.1} parent=0 // pred_check
    _
  $region7: #{tpu_custom_call.1} parent=0 // pred_check_branch
    %10 = sbr.rel (0) target = $region9
  $region8: #{tpu_custom_call.1} parent=0 // pred_region
    _
  $region9: #{tpu_custom_call.1} parent=0 // pred_fallthru
    _
  %s11 = sadd.s32 0, 0
  %s12 = smul.u32 8, %s11
  %p13 = scmp.lt.s32.totalorder %s12, 7
  %s14 = scalar_select %p13, %s12, 7
  %s15 = smul.addr %s14, 8
  %s16 = scalar_lea.vmem %s2, %s15
  %s17 = sadd.s32 0, 0
  %s18 = smul.u32 8, %s17
  %p19 = scmp.lt.s32.totalorder %s18, 7
  %s20 = scalar_select %p19, %s18, 7
  %s21 = smul.addr %s20, 8
  %s22 = scalar_lea.vmem %s2, %s21
  %s23 = sadd.s32 0, 0
  %s24 = smul.u32 8, %s23
  %s26 = smul.u32 0, 8
  %s27 = smul.u32 %s26, 2
  %s28 = smul.addr %s27, 4
  %s29 = scalar_lea.vmem %s0, %s28
  %v30 = vld [vmem:[%s29] sm:$0xf]
  %v31 = vld [vmem:[%s29 + $0x8] sm:$0xf]
  %v32 = vld [vmem:[%s29 + $0x10] sm:$0xf]
  %v33 = vld [vmem:[%s29 + $0x18] sm:$0xf]
  %v34 = vld [vmem:[%s29 + $0x20] sm:$0xf]
  %v35 = vld [vmem:[%s29 + $0x28] sm:$0xf]
  %v36 = vld [vmem:[%s29 + $0x30] sm:$0xf]
  %v37 = vld [vmem:[%s29 + $0x38] sm:$0xf]
  %v38 = vld [vmem:[%s1] sm:$0xf]
  %s39 = sadd.s32 %s27, 18
  %s40 = smul.addr %s39, 4
  %s41 = scalar_lea.vmem %s0, %s40
  %v42 = vld [vmem:[%s41] sm:$0xf]
  %v43 = vld [vmem:[%s41 + $0x8] sm:$0xf]
  %v44 = vld [vmem:[%s41 + $0x10] sm:$0xf]
  %v45 = vld [vmem:[%s41 + $0x18] sm:$0xf]
  %v46 = vld [vmem:[%s41 + $0x20] sm:$0xf]
  %v47 = vld [vmem:[%s41 + $0x28] sm:$0xf]
  %v48 = vld [vmem:[%s41 + $0x30] sm:$0xf]
  %v49 = vld [vmem:[%s41 + $0x38] sm:$0xf]
  %s50 = scalar_lea.vmem %s1, 4
  %v51 = vld [vmem:[%s50] sm:$0xf]
  %v60 = vunpack.c.l.b16 %v42
  %v61 = vunpack.c.l.b16 %v43
  %v62 = vunpack.c.l.b16 %v44
  %v63 = vunpack.c.l.b16 %v45
  %v64 = vunpack.c.l.b16 %v46
  %v65 = vunpack.c.l.b16 %v47
  %v66 = vunpack.c.l.b16 %v48
  %v67 = vunpack.c.l.b16 %v49
  %v68 = vpack.c.b16 %v61, %v60
  %v69 = vpack.c.b16 %v63, %v62
  %v70 = vpack.c.b16 %v65, %v64
  %v71 = vpack.c.b16 %v67, %v66
  %vm72 = vcmask 64512
  %v74 = vsel %vm72, %v68, 0
  %v77 = vsel %vm72, %v69, 0
  %v80 = vsel %vm72, %v70, 0
  %v83 = vsel %vm72, %v71, 0
  %vm85 = vcmask 1043456
  %v87 = vsel %vm85, %v51, 0
  %89 = vmatprep.subr.bf16.mxu0 0
  %90 = vmatpush1.bf16.msra.mxu0 0
  %91 = vmatprep.subr.bf16.mxu0 0
  %92 = vmatpush1.bf16.msra.mxu0 0
  %93 = vmatprep.subr.bf16.mxu0 0
  %94 = vmatpush1.bf16.msra.mxu0 0
  %95 = vmatprep.subr.bf16.mxu0 0
  %96 = vmatpush1.bf16.msra.mxu0 0
  %97 = vmatprep.subr.bf16.mxu0 0
  %98 = vmatpush1.bf16.msra.mxu0 0
  %99 = vmatprep.subr.bf16.mxu0 0
  %100 = vmatpush1.bf16.msra.mxu0 0
  %101 = vmatprep.subr.bf16.mxu0 0
  %102 = vmatpush1.bf16.msra.mxu0 0
  %103 = vmatprep.subr.bf16.mxu0 0
  %104 = vmatpush1.bf16.msra.mxu0 %v87
  %105 = vmatprep.subr.bf16.mxu0 0
  %106 = vmatpush2.bf16.msra.mxu0 0
  %107 = vmatprep.subr.bf16.mxu0 0
  %108 = vmatpush2.bf16.msra.mxu0 0
  %109 = vmatprep.subr.bf16.mxu0 0
  %110 = vmatpush2.bf16.msra.mxu0 0
  %111 = vmatprep.subr.bf16.mxu0 0
  %112 = vmatpush2.bf16.msra.mxu0 0
  %113 = vmatprep.subr.bf16.mxu0 0
  %114 = vmatpush2.bf16.msra.mxu0 0
  %115 = vmatprep.subr.bf16.mxu0 0
  %116 = vmatpush2.bf16.msra.mxu0 0
  %117 = vmatprep.subr.bf16.mxu0 0
  %118 = vmatpush2.bf16.msra.mxu0 0
  %119 = vmatprep.subr.bf16.mxu0 0
  %120 = vmatpush2.bf16.msra.mxu0 0
  %121 = vmatprep.mubr.bf16.mxu0 0
  %122 = vmatmul.mubr.bf16.gmra.mxu0 %v74
  %v123 = vpop.f32.mrf.mxu0
  %v124 = vadd.f32 0.0, %v123
  %v125 = vpop.f32.mrf.mxu0
  %v126 = vpop.f32.mrf.mxu0
  %v127 = vadd.f32 0.0, %v126
  %v128 = vpop.f32.mrf.mxu0
  %129 = vmatprep.mubr.bf16.mxu0 0
  %130 = vmatmul.mubr.bf16.gmra.mxu0 %v77
  %v131 = vpop.f32.mrf.mxu0
  %v132 = vadd.f32 0.0, %v131
  %v133 = vpop.f32.mrf.mxu0
  %v134 = vpop.f32.mrf.mxu0
  %v135 = vadd.f32 0.0, %v134
  %v136 = vpop.f32.mrf.mxu0
  %137 = vmatprep.mubr.bf16.mxu0 0
  %138 = vmatmul.mubr.bf16.gmra.mxu0 %v80
  %v139 = vpop.f32.mrf.mxu0
  %v140 = vadd.f32 0.0, %v139
  %v141 = vpop.f32.mrf.mxu0
  %v142 = vpop.f32.mrf.mxu0
  %v143 = vadd.f32 0.0, %v142
  %v144 = vpop.f32.mrf.mxu0
  %145 = vmatprep.mubr.bf16.mxu0 0
  %146 = vmatmul.mubr.bf16.gmra.mxu0 %v83
  %v147 = vpop.f32.mrf.mxu0
  %v148 = vadd.f32 0.0, %v147
  %v149 = vpop.f32.mrf.mxu0
  %v150 = vpop.f32.mrf.mxu0
  %v151 = vadd.f32 0.0, %v150
  %v152 = vpop.f32.mrf.mxu0
  %153 = vdwg.mxu0
  %v162 = vunpack.c.l.b16 %v30
  %v163 = vunpack.c.l.b16 %v31
  %v164 = vunpack.c.l.b16 %v32
  %v165 = vunpack.c.l.b16 %v33
  %v166 = vunpack.c.l.b16 %v34
  %v167 = vunpack.c.l.b16 %v35
  %v168 = vunpack.c.l.b16 %v36
  %v169 = vunpack.c.l.b16 %v37
  %v170 = vpack.c.b16 %v163, %v162
  %v171 = vpack.c.b16 %v165, %v164
  %v172 = vpack.c.b16 %v167, %v166
  %v173 = vpack.c.b16 %v169, %v168
  %v175 = vsel %vm72, %v170, 0
  %v178 = vsel %vm72, %v171, 0
  %v181 = vsel %vm72, %v172, 0
  %v184 = vsel %vm72, %v173, 0
  %v187 = vsel %vm85, %v38, 0
  %189 = vmatprep.subr.bf16.mxu0 0
  %190 = vmatpush1.bf16.msra.mxu0 0
  %191 = vmatprep.subr.bf16.mxu0 0
  %192 = vmatpush1.bf16.msra.mxu0 0
  %193 = vmatprep.subr.bf16.mxu0 0
  %194 = vmatpush1.bf16.msra.mxu0 0
  %195 = vmatprep.subr.bf16.mxu0 0
  %196 = vmatpush1.bf16.msra.mxu0 0
  %197 = vmatprep.subr.bf16.mxu0 0
  %198 = vmatpush1.bf16.msra.mxu0 0
  %199 = vmatprep.subr.bf16.mxu0 0
  %200 = vmatpush1.bf16.msra.mxu0 0
  %201 = vmatprep.subr.bf16.mxu0 0
  %202 = vmatpush1.bf16.msra.mxu0 0
  %203 = vmatprep.subr.bf16.mxu0 0
  %204 = vmatpush1.bf16.msra.mxu0 %v187
  %205 = vmatprep.subr.bf16.mxu0 0
  %206 = vmatpush2.bf16.msra.mxu0 0
  %207 = vmatprep.subr.bf16.mxu0 0
  %208 = vmatpush2.bf16.msra.mxu0 0
  %209 = vmatprep.subr.bf16.mxu0 0
  %210 = vmatpush2.bf16.msra.mxu0 0
  %211 = vmatprep.subr.bf16.mxu0 0
  %212 = vmatpush2.bf16.msra.mxu0 0
  %213 = vmatprep.subr.bf16.mxu0 0
  %214 = vmatpush2.bf16.msra.mxu0 0
  %215 = vmatprep.subr.bf16.mxu0 0
  %216 = vmatpush2.bf16.msra.mxu0 0
  %217 = vmatprep.subr.bf16.mxu0 0
  %218 = vmatpush2.bf16.msra.mxu0 0
  %219 = vmatprep.subr.bf16.mxu0 0
  %220 = vmatpush2.bf16.msra.mxu0 0
  %221 = vmatprep.mubr.bf16.mxu0 0
  %222 = vmatmul.mubr.bf16.gmra.mxu0 %v175
  %v223 = vpop.f32.mrf.mxu0
  %v224 = vadd.f32 %v124, %v223
  %v225 = vpop.f32.mrf.mxu0
  %v226 = vpop.f32.mrf.mxu0
  %v227 = vadd.f32 %v127, %v226
  %v228 = vpop.f32.mrf.mxu0
  %229 = vmatprep.mubr.bf16.mxu0 0
  %230 = vmatmul.mubr.bf16.gmra.mxu0 %v178
  %v231 = vpop.f32.mrf.mxu0
  %v232 = vadd.f32 %v132, %v231
  %v233 = vpop.f32.mrf.mxu0
  %v234 = vpop.f32.mrf.mxu0
  %v235 = vadd.f32 %v135, %v234
  %v236 = vpop.f32.mrf.mxu0
  %237 = vmatprep.mubr.bf16.mxu0 0
  %238 = vmatmul.mubr.bf16.gmra.mxu0 %v181
  %v239 = vpop.f32.mrf.mxu0
  %v240 = vadd.f32 %v140, %v239
  %v241 = vpop.f32.mrf.mxu0
  %v242 = vpop.f32.mrf.mxu0
  %v243 = vadd.f32 %v143, %v242
  %v244 = vpop.f32.mrf.mxu0
  %245 = vmatprep.mubr.bf16.mxu0 0
  %246 = vmatmul.mubr.bf16.gmra.mxu0 %v184
  %v247 = vpop.f32.mrf.mxu0
  %v248 = vadd.f32 %v148, %v247
  %v249 = vpop.f32.mrf.mxu0
  %v250 = vpop.f32.mrf.mxu0
  %v251 = vadd.f32 %v151, %v250
  %v252 = vpop.f32.mrf.mxu0
  %253 = vdwg.mxu0
  %v254 = vld [vmem:[%s29] sm:$0xf]
  %v255 = vld [vmem:[%s29 + $0x4] sm:$0x1]
  %v256 = vld [vmem:[%s29 + $0x8] sm:$0xf]
  %v257 = vld [vmem:[%s29 + $0xc] sm:$0x1]
  %v258 = vld [vmem:[%s29 + $0x10] sm:$0xf]
  %v259 = vld [vmem:[%s29 + $0x14] sm:$0x1]
  %v260 = vld [vmem:[%s29 + $0x18] sm:$0xf]
  %v261 = vld [vmem:[%s29 + $0x1c] sm:$0x1]
  %v262 = vld [vmem:[%s29 + $0x20] sm:$0xf]
  %v263 = vld [vmem:[%s29 + $0x24] sm:$0x1]
  %v264 = vld [vmem:[%s29 + $0x28] sm:$0xf]
  %v265 = vld [vmem:[%s29 + $0x2c] sm:$0x1]
  %v266 = vld [vmem:[%s29 + $0x30] sm:$0xf]
  %v267 = vld [vmem:[%s29 + $0x34] sm:$0x1]
  %v268 = vld [vmem:[%s29 + $0x38] sm:$0xf]
  %v269 = vld [vmem:[%s29 + $0x3c] sm:$0x1]
  %vm270 = vsmask.f32 3328
  %vm271 = vsmask.f32 7440
  %vm272 = vmor %vm270, %vm271
  %v274 = vshrl.u32 %v254, 16
  %v276 = vrot.slane %v274, 4
  %v277 = vshll.u32 %v254, 16
  %v279 = vrot.slane %v277, 5
  %v280 = vor.u32 %v276, %v279
  %v281 = vrot.slane %v280, 4
  %v283 = vshll.u32 %v255, 16
  %v285 = vrot.slane %v283, 5
  %v286 = vsel %vm272, %v281, %v285
  %v288 = vshrl.u32 %v256, 16
  %v290 = vrot.slane %v288, 4
  %v291 = vshll.u32 %v256, 16
  %v293 = vrot.slane %v291, 5
  %v294 = vor.u32 %v290, %v293
  %v295 = vrot.slane %v294, 4
  %v297 = vshll.u32 %v257, 16
  %v299 = vrot.slane %v297, 5
  %v300 = vsel %vm272, %v295, %v299
  %v302 = vshrl.u32 %v258, 16
  %v304 = vrot.slane %v302, 4
  %v305 = vshll.u32 %v258, 16
  %v307 = vrot.slane %v305, 5
  %v308 = vor.u32 %v304, %v307
  %v309 = vrot.slane %v308, 4
  %v311 = vshll.u32 %v259, 16
  %v313 = vrot.slane %v311, 5
  %v314 = vsel %vm272, %v309, %v313
  %v316 = vshrl.u32 %v260, 16
  %v318 = vrot.slane %v316, 4
  %v319 = vshll.u32 %v260, 16
  %v321 = vrot.slane %v319, 5
  %v322 = vor.u32 %v318, %v321
  %v323 = vrot.slane %v322, 4
  %v325 = vshll.u32 %v261, 16
  %v327 = vrot.slane %v325, 5
  %v328 = vsel %vm272, %v323, %v327
  %v330 = vshrl.u32 %v262, 16
  %v332 = vrot.slane %v330, 4
  %v333 = vshll.u32 %v262, 16
  %v335 = vrot.slane %v333, 5
  %v336 = vor.u32 %v332, %v335
  %v337 = vrot.slane %v336, 4
  %v339 = vshll.u32 %v263, 16
  %v341 = vrot.slane %v339, 5
  %v342 = vsel %vm272, %v337, %v341
  %v344 = vshrl.u32 %v264, 16
  %v346 = vrot.slane %v344, 4
  %v347 = vshll.u32 %v264, 16
  %v349 = vrot.slane %v347, 5
  %v350 = vor.u32 %v346, %v349
  %v351 = vrot.slane %v350, 4
  %v353 = vshll.u32 %v265, 16
  %v355 = vrot.slane %v353, 5
  %v356 = vsel %vm272, %v351, %v355
  %v358 = vshrl.u32 %v266, 16
  %v360 = vrot.slane %v358, 4
  %v361 = vshll.u32 %v266, 16
  %v363 = vrot.slane %v361, 5
  %v364 = vor.u32 %v360, %v363
  %v365 = vrot.slane %v364, 4
  %v367 = vshll.u32 %v267, 16
  %v369 = vrot.slane %v367, 5
  %v370 = vsel %vm272, %v365, %v369
  %v372 = vshrl.u32 %v268, 16
  %v374 = vrot.slane %v372, 4
  %v375 = vshll.u32 %v268, 16
  %v377 = vrot.slane %v375, 5
  %v378 = vor.u32 %v374, %v377
  %v379 = vrot.slane %v378, 4
  %v381 = vshll.u32 %v269, 16
  %v383 = vrot.slane %v381, 5
  %v384 = vsel %vm272, %v379, %v383
  %s385 = scalar_lea.vmem %s1, 8
  %v386 = vld [vmem:[%s385] sm:$0xf]
  %v387 = vunpack.c.l.b16 %v286
  %v388 = vunpack.c.l.b16 %v300
  %v389 = vunpack.c.l.b16 %v314
  %v390 = vunpack.c.l.b16 %v328
  %v391 = vunpack.c.l.b16 %v342
  %v392 = vunpack.c.l.b16 %v356
  %v393 = vunpack.c.l.b16 %v370
  %v394 = vunpack.c.l.b16 %v384
  %v395 = vpack.c.b16 %v388, %v387
  %v396 = vpack.c.b16 %v390, %v389
  %v397 = vpack.c.b16 %v392, %v391
  %v398 = vpack.c.b16 %v394, %v393
  %v400 = vsel %vm72, %v395, 0
  %v403 = vsel %vm72, %v396, 0
  %v406 = vsel %vm72, %v397, 0
  %v409 = vsel %vm72, %v398, 0
  %v412 = vsel %vm85, %v386, 0
  %414 = vmatprep.subr.bf16.mxu0 0
  %415 = vmatpush1.bf16.msra.mxu0 0
  %416 = vmatprep.subr.bf16.mxu0 0
  %417 = vmatpush1.bf16.msra.mxu0 0
  %418 = vmatprep.subr.bf16.mxu0 0
  %419 = vmatpush1.bf16.msra.mxu0 0
  %420 = vmatprep.subr.bf16.mxu0 0
  %421 = vmatpush1.bf16.msra.mxu0 0
  %422 = vmatprep.subr.bf16.mxu0 0
  %423 = vmatpush1.bf16.msra.mxu0 0
  %424 = vmatprep.subr.bf16.mxu0 0
  %425 = vmatpush1.bf16.msra.mxu0 0
  %426 = vmatprep.subr.bf16.mxu0 0
  %427 = vmatpush1.bf16.msra.mxu0 0
  %428 = vmatprep.subr.bf16.mxu0 0
  %429 = vmatpush1.bf16.msra.mxu0 %v412
  %430 = vmatprep.subr.bf16.mxu0 0
  %431 = vmatpush2.bf16.msra.mxu0 0
  %432 = vmatprep.subr.bf16.mxu0 0
  %433 = vmatpush2.bf16.msra.mxu0 0
  %434 = vmatprep.subr.bf16.mxu0 0
  %435 = vmatpush2.bf16.msra.mxu0 0
  %436 = vmatprep.subr.bf16.mxu0 0
  %437 = vmatpush2.bf16.msra.mxu0 0
  %438 = vmatprep.subr.bf16.mxu0 0
  %439 = vmatpush2.bf16.msra.mxu0 0
  %440 = vmatprep.subr.bf16.mxu0 0
  %441 = vmatpush2.bf16.msra.mxu0 0
  %442 = vmatprep.subr.bf16.mxu0 0
  %443 = vmatpush2.bf16.msra.mxu0 0
  %444 = vmatprep.subr.bf16.mxu0 0
  %445 = vmatpush2.bf16.msra.mxu0 0
  %446 = vmatprep.mubr.bf16.mxu0 0
  %447 = vmatmul.mubr.bf16.gmra.mxu0 %v400
  %v448 = vpop.f32.mrf.mxu0
  %v449 = vadd.f32 0.0, %v448
  %v450 = vpop.f32.mrf.mxu0
  %v451 = vpop.f32.mrf.mxu0
  %v452 = vadd.f32 0.0, %v451
  %v453 = vpop.f32.mrf.mxu0
  %454 = vmatprep.mubr.bf16.mxu0 0
  %455 = vmatmul.mubr.bf16.gmra.mxu0 %v403
  %v456 = vpop.f32.mrf.mxu0
  %v457 = vadd.f32 0.0, %v456
  %v458 = vpop.f32.mrf.mxu0
  %v459 = vpop.f32.mrf.mxu0
  %v460 = vadd.f32 0.0, %v459
  %v461 = vpop.f32.mrf.mxu0
  %462 = vmatprep.mubr.bf16.mxu0 0
  %463 = vmatmul.mubr.bf16.gmra.mxu0 %v406
  %v464 = vpop.f32.mrf.mxu0
  %v465 = vadd.f32 0.0, %v464
  %v466 = vpop.f32.mrf.mxu0
  %v467 = vpop.f32.mrf.mxu0
  %v468 = vadd.f32 0.0, %v467
  %v469 = vpop.f32.mrf.mxu0
  %470 = vmatprep.mubr.bf16.mxu0 0
  %471 = vmatmul.mubr.bf16.gmra.mxu0 %v409
  %v472 = vpop.f32.mrf.mxu0
  %v473 = vadd.f32 0.0, %v472
  %v474 = vpop.f32.mrf.mxu0
  %v475 = vpop.f32.mrf.mxu0
  %v476 = vadd.f32 0.0, %v475
  %v477 = vpop.f32.mrf.mxu0
  %478 = vdwg.mxu0
  %v479 = vadd.f32 %v224, %v449
  %v480 = vadd.f32 %v227, %v452
  %v481 = vadd.f32 %v232, %v457
  %v482 = vadd.f32 %v235, %v460
  %v483 = vadd.f32 %v240, %v465
  %v484 = vadd.f32 %v243, %v468
  %v485 = vadd.f32 %v248, %v473
  %v486 = vadd.f32 %v251, %v476
  %v487 = vld [vmem:[%s41] sm:$0xf]
  %v488 = vld [vmem:[%s41 + $0x4] sm:$0x1]
  %v489 = vld [vmem:[%s41 + $0x8] sm:$0xf]
  %v490 = vld [vmem:[%s41 + $0xc] sm:$0x1]
  %v491 = vld [vmem:[%s41 + $0x10] sm:$0xf]
  %v492 = vld [vmem:[%s41 + $0x14] sm:$0x1]
  %v493 = vld [vmem:[%s41 + $0x18] sm:$0xf]
  %v494 = vld [vmem:[%s41 + $0x1c] sm:$0x1]
  %v495 = vld [vmem:[%s41 + $0x20] sm:$0xf]
  %v496 = vld [vmem:[%s41 + $0x24] sm:$0x1]
  %v497 = vld [vmem:[%s41 + $0x28] sm:$0xf]
  %v498 = vld [vmem:[%s41 + $0x2c] sm:$0x1]
  %v499 = vld [vmem:[%s41 + $0x30] sm:$0xf]
  %v500 = vld [vmem:[%s41 + $0x34] sm:$0x1]
  %v501 = vld [vmem:[%s41 + $0x38] sm:$0xf]
  %v502 = vld [vmem:[%s41 + $0x3c] sm:$0x1]
  %v504 = vshrl.u32 %v487, 16
  %v506 = vrot.slane %v504, 4
  %v507 = vshll.u32 %v487, 16
  %v509 = vrot.slane %v507, 5
  %v510 = vor.u32 %v506, %v509
  %v511 = vrot.slane %v510, 4
  %v513 = vshll.u32 %v488, 16
  %v515 = vrot.slane %v513, 5
  %v516 = vsel %vm272, %v511, %v515
  %v518 = vshrl.u32 %v489, 16
  %v520 = vrot.slane %v518, 4
  %v521 = vshll.u32 %v489, 16
  %v523 = vrot.slane %v521, 5
  %v524 = vor.u32 %v520, %v523
  %v525 = vrot.slane %v524, 4
  %v527 = vshll.u32 %v490, 16
  %v529 = vrot.slane %v527, 5
  %v530 = vsel %vm272, %v525, %v529
  %v532 = vshrl.u32 %v491, 16
  %v534 = vrot.slane %v532, 4
  %v535 = vshll.u32 %v491, 16
  %v537 = vrot.slane %v535, 5
  %v538 = vor.u32 %v534, %v537
  %v539 = vrot.slane %v538, 4
  %v541 = vshll.u32 %v492, 16
  %v543 = vrot.slane %v541, 5
  %v544 = vsel %vm272, %v539, %v543
  %v546 = vshrl.u32 %v493, 16
  %v548 = vrot.slane %v546, 4
  %v549 = vshll.u32 %v493, 16
  %v551 = vrot.slane %v549, 5
  %v552 = vor.u32 %v548, %v551
  %v553 = vrot.slane %v552, 4
  %v555 = vshll.u32 %v494, 16
  %v557 = vrot.slane %v555, 5
  %v558 = vsel %vm272, %v553, %v557
  %v560 = vshrl.u32 %v495, 16
  %v562 = vrot.slane %v560, 4
  %v563 = vshll.u32 %v495, 16
  %v565 = vrot.slane %v563, 5
  %v566 = vor.u32 %v562, %v565
  %v567 = vrot.slane %v566, 4
  %v569 = vshll.u32 %v496, 16
  %v571 = vrot.slane %v569, 5
  %v572 = vsel %vm272, %v567, %v571
  %v574 = vshrl.u32 %v497, 16
  %v576 = vrot.slane %v574, 4
  %v577 = vshll.u32 %v497, 16
  %v579 = vrot.slane %v577, 5
  %v580 = vor.u32 %v576, %v579
  %v581 = vrot.slane %v580, 4
  %v583 = vshll.u32 %v498, 16
  %v585 = vrot.slane %v583, 5
  %v586 = vsel %vm272, %v581, %v585
  %v588 = vshrl.u32 %v499, 16
  %v590 = vrot.slane %v588, 4
  %v591 = vshll.u32 %v499, 16
  %v593 = vrot.slane %v591, 5
  %v594 = vor.u32 %v590, %v593
  %v595 = vrot.slane %v594, 4
  %v597 = vshll.u32 %v500, 16
  %v599 = vrot.slane %v597, 5
  %v600 = vsel %vm272, %v595, %v599
  %v602 = vshrl.u32 %v501, 16
  %v604 = vrot.slane %v602, 4
  %v605 = vshll.u32 %v501, 16
  %v607 = vrot.slane %v605, 5
  %v608 = vor.u32 %v604, %v607
  %v609 = vrot.slane %v608, 4
  %v611 = vshll.u32 %v502, 16
  %v613 = vrot.slane %v611, 5
  %v614 = vsel %vm272, %v609, %v613
  %s615 = scalar_lea.vmem %s1, 12
  %v616 = vld [vmem:[%s615] sm:$0xf]
  %v617 = vunpack.c.l.b16 %v516
  %v618 = vunpack.c.l.b16 %v530
  %v619 = vunpack.c.l.b16 %v544
  %v620 = vunpack.c.l.b16 %v558
  %v621 = vunpack.c.l.b16 %v572
  %v622 = vunpack.c.l.b16 %v586
  %v623 = vunpack.c.l.b16 %v600
  %v624 = vunpack.c.l.b16 %v614
  %v625 = vpack.c.b16 %v618, %v617
  %v626 = vpack.c.b16 %v620, %v619
  %v627 = vpack.c.b16 %v622, %v621
  %v628 = vpack.c.b16 %v624, %v623
  %v630 = vsel %vm72, %v625, 0
  %v633 = vsel %vm72, %v626, 0
  %v636 = vsel %vm72, %v627, 0
  %v639 = vsel %vm72, %v628, 0
  %v642 = vsel %vm85, %v616, 0
  %644 = vmatprep.subr.bf16.mxu0 0
  %645 = vmatpush1.bf16.msra.mxu0 0
  %646 = vmatprep.subr.bf16.mxu0 0
  %647 = vmatpush1.bf16.msra.mxu0 0
  %648 = vmatprep.subr.bf16.mxu0 0
  %649 = vmatpush1.bf16.msra.mxu0 0
  %650 = vmatprep.subr.bf16.mxu0 0
  %651 = vmatpush1.bf16.msra.mxu0 0
  %652 = vmatprep.subr.bf16.mxu0 0
  %653 = vmatpush1.bf16.msra.mxu0 0
  %654 = vmatprep.subr.bf16.mxu0 0
  %655 = vmatpush1.bf16.msra.mxu0 0
  %656 = vmatprep.subr.bf16.mxu0 0
  %657 = vmatpush1.bf16.msra.mxu0 0
  %658 = vmatprep.subr.bf16.mxu0 0
  %659 = vmatpush1.bf16.msra.mxu0 %v642
  %660 = vmatprep.subr.bf16.mxu0 0
  %661 = vmatpush2.bf16.msra.mxu0 0
  %662 = vmatprep.subr.bf16.mxu0 0
  %663 = vmatpush2.bf16.msra.mxu0 0
  %664 = vmatprep.subr.bf16.mxu0 0
  %665 = vmatpush2.bf16.msra.mxu0 0
  %666 = vmatprep.subr.bf16.mxu0 0
  %667 = vmatpush2.bf16.msra.mxu0 0
  %668 = vmatprep.subr.bf16.mxu0 0
  %669 = vmatpush2.bf16.msra.mxu0 0
  %670 = vmatprep.subr.bf16.mxu0 0
  %671 = vmatpush2.bf16.msra.mxu0 0
  %672 = vmatprep.subr.bf16.mxu0 0
  %673 = vmatpush2.bf16.msra.mxu0 0
  %674 = vmatprep.subr.bf16.mxu0 0
  %675 = vmatpush2.bf16.msra.mxu0 0
  %676 = vmatprep.mubr.bf16.mxu0 0
  %677 = vmatmul.mubr.bf16.gmra.mxu0 %v630
  %v678 = vpop.f32.mrf.mxu0
  %v679 = vadd.f32 0.0, %v678
  %v680 = vpop.f32.mrf.mxu0
  %v681 = vpop.f32.mrf.mxu0
  %v682 = vadd.f32 0.0, %v681
  %v683 = vpop.f32.mrf.mxu0
  %684 = vmatprep.mubr.bf16.mxu0 0
  %685 = vmatmul.mubr.bf16.gmra.mxu0 %v633
  %v686 = vpop.f32.mrf.mxu0
  %v687 = vadd.f32 0.0, %v686
  %v688 = vpop.f32.mrf.mxu0
  %v689 = vpop.f32.mrf.mxu0
  %v690 = vadd.f32 0.0, %v689
  %v691 = vpop.f32.mrf.mxu0
  %692 = vmatprep.mubr.bf16.mxu0 0
  %693 = vmatmul.mubr.bf16.gmra.mxu0 %v636
  %v694 = vpop.f32.mrf.mxu0
  %v695 = vadd.f32 0.0, %v694
  %v696 = vpop.f32.mrf.mxu0
  %v697 = vpop.f32.mrf.mxu0
  %v698 = vadd.f32 0.0, %v697
  %v699 = vpop.f32.mrf.mxu0
  %700 = vmatprep.mubr.bf16.mxu0 0
  %701 = vmatmul.mubr.bf16.gmra.mxu0 %v639
  %v702 = vpop.f32.mrf.mxu0
  %v703 = vadd.f32 0.0, %v702
  %v704 = vpop.f32.mrf.mxu0
  %v705 = vpop.f32.mrf.mxu0
  %v706 = vadd.f32 0.0, %v705
  %v707 = vpop.f32.mrf.mxu0
  %708 = vdwg.mxu0
  %v709 = vadd.f32 %v479, %v679
  %v710 = vadd.f32 %v480, %v682
  %v711 = vadd.f32 %v481, %v687
  %v712 = vadd.f32 %v482, %v690
  %v713 = vadd.f32 %v483, %v695
  %v714 = vadd.f32 %v484, %v698
  %v715 = vadd.f32 %v485, %v703
  %v716 = vadd.f32 %v486, %v706
  %s717 = sadd.s32 %s27, 36
  %s718 = smul.addr %s717, 4
  %s719 = scalar_lea.vmem %s0, %s718
  %v720 = vld [vmem:[%s719] sm:$0xf]
  %v721 = vld [vmem:[%s719 + $0x8] sm:$0xf]
  %v722 = vld [vmem:[%s719 + $0x10] sm:$0xf]
  %v723 = vld [vmem:[%s719 + $0x18] sm:$0xf]
  %v724 = vld [vmem:[%s719 + $0x20] sm:$0xf]
  %v725 = vld [vmem:[%s719 + $0x28] sm:$0xf]
  %v726 = vld [vmem:[%s719 + $0x30] sm:$0xf]
  %v727 = vld [vmem:[%s719 + $0x38] sm:$0xf]
  %s728 = scalar_lea.vmem %s1, 16
  %v729 = vld [vmem:[%s728] sm:$0xf]
  %v738 = vunpack.c.l.b16 %v720
  %v739 = vunpack.c.l.b16 %v721
  %v740 = vunpack.c.l.b16 %v722
  %v741 = vunpack.c.l.b16 %v723
  %v742 = vunpack.c.l.b16 %v724
  %v743 = vunpack.c.l.b16 %v725
  %v744 = vunpack.c.l.b16 %v726
  %v745 = vunpack.c.l.b16 %v727
  %v746 = vpack.c.b16 %v739, %v738
  %v747 = vpack.c.b16 %v741, %v740
  %v748 = vpack.c.b16 %v743, %v742
  %v749 = vpack.c.b16 %v745, %v744
  %v751 = vsel %vm72, %v746, 0
  %v754 = vsel %vm72, %v747, 0
  %v757 = vsel %vm72, %v748, 0
  %v760 = vsel %vm72, %v749, 0
  %v763 = vsel %vm85, %v729, 0
  %765 = vmatprep.subr.bf16.mxu0 0
  %766 = vmatpush1.bf16.msra.mxu0 0
  %767 = vmatprep.subr.bf16.mxu0 0
  %768 = vmatpush1.bf16.msra.mxu0 0
  %769 = vmatprep.subr.bf16.mxu0 0
  %770 = vmatpush1.bf16.msra.mxu0 0
  %771 = vmatprep.subr.bf16.mxu0 0
  %772 = vmatpush1.bf16.msra.mxu0 0
  %773 = vmatprep.subr.bf16.mxu0 0
  %774 = vmatpush1.bf16.msra.mxu0 0
  %775 = vmatprep.subr.bf16.mxu0 0
  %776 = vmatpush1.bf16.msra.mxu0 0
  %777 = vmatprep.subr.bf16.mxu0 0
  %778 = vmatpush1.bf16.msra.mxu0 0
  %779 = vmatprep.subr.bf16.mxu0 0
  %780 = vmatpush1.bf16.msra.mxu0 %v763
  %781 = vmatprep.subr.bf16.mxu0 0
  %782 = vmatpush2.bf16.msra.mxu0 0
  %783 = vmatprep.subr.bf16.mxu0 0
  %784 = vmatpush2.bf16.msra.mxu0 0
  %785 = vmatprep.subr.bf16.mxu0 0
  %786 = vmatpush2.bf16.msra.mxu0 0
  %787 = vmatprep.subr.bf16.mxu0 0
  %788 = vmatpush2.bf16.msra.mxu0 0
  %789 = vmatprep.subr.bf16.mxu0 0
  %790 = vmatpush2.bf16.msra.mxu0 0
  %791 = vmatprep.subr.bf16.mxu0 0
  %792 = vmatpush2.bf16.msra.mxu0 0
  %793 = vmatprep.subr.bf16.mxu0 0
  %794 = vmatpush2.bf16.msra.mxu0 0
  %795 = vmatprep.subr.bf16.mxu0 0
  %796 = vmatpush2.bf16.msra.mxu0 0
  %797 = vmatprep.mubr.bf16.mxu0 0
  %798 = vmatmul.mubr.bf16.gmra.mxu0 %v751
  %v799 = vpop.f32.mrf.mxu0
  %v800 = vadd.f32 0.0, %v799
  %v801 = vpop.f32.mrf.mxu0
  %v802 = vpop.f32.mrf.mxu0
  %v803 = vadd.f32 0.0, %v802
  %v804 = vpop.f32.mrf.mxu0
  %805 = vmatprep.mubr.bf16.mxu0 0
  %806 = vmatmul.mubr.bf16.gmra.mxu0 %v754
  %v807 = vpop.f32.mrf.mxu0
  %v808 = vadd.f32 0.0, %v807
  %v809 = vpop.f32.mrf.mxu0
  %v810 = vpop.f32.mrf.mxu0
  %v811 = vadd.f32 0.0, %v810
  %v812 = vpop.f32.mrf.mxu0
  %813 = vmatprep.mubr.bf16.mxu0 0
  %814 = vmatmul.mubr.bf16.gmra.mxu0 %v757
  %v815 = vpop.f32.mrf.mxu0
  %v816 = vadd.f32 0.0, %v815
  %v817 = vpop.f32.mrf.mxu0
  %v818 = vpop.f32.mrf.mxu0
  %v819 = vadd.f32 0.0, %v818
  %v820 = vpop.f32.mrf.mxu0
  %821 = vmatprep.mubr.bf16.mxu0 0
  %822 = vmatmul.mubr.bf16.gmra.mxu0 %v760
  %v823 = vpop.f32.mrf.mxu0
  %v824 = vadd.f32 0.0, %v823
  %v825 = vpop.f32.mrf.mxu0
  %v826 = vpop.f32.mrf.mxu0
  %v827 = vadd.f32 0.0, %v826
  %v828 = vpop.f32.mrf.mxu0
  %829 = vdwg.mxu0
  %v830 = vadd.f32 %v709, %v800
  %v831 = vadd.f32 %v710, %v803
  %v832 = vadd.f32 %v711, %v808
  %v833 = vadd.f32 %v712, %v811
  %v834 = vadd.f32 %v713, %v816
  %v835 = vadd.f32 %v714, %v819
  %v836 = vadd.f32 %v715, %v824
  %v837 = vadd.f32 %v716, %v827
  %s838 = sadd.s32 %s27, 54
  %s839 = smul.addr %s838, 4
  %s840 = scalar_lea.vmem %s0, %s839
  %v841 = vld [vmem:[%s840] sm:$0xf]
  %v842 = vld [vmem:[%s840 + $0x8] sm:$0xf]
  %v843 = vld [vmem:[%s840 + $0x10] sm:$0xf]
  %v844 = vld [vmem:[%s840 + $0x18] sm:$0xf]
  %v845 = vld [vmem:[%s840 + $0x20] sm:$0xf]
  %v846 = vld [vmem:[%s840 + $0x28] sm:$0xf]
  %v847 = vld [vmem:[%s840 + $0x30] sm:$0xf]
  %v848 = vld [vmem:[%s840 + $0x38] sm:$0xf]
  %s849 = scalar_lea.vmem %s1, 20
  %v850 = vld [vmem:[%s849] sm:$0xf]
  %v859 = vunpack.c.l.b16 %v841
  %v860 = vunpack.c.l.b16 %v842
  %v861 = vunpack.c.l.b16 %v843
  %v862 = vunpack.c.l.b16 %v844
  %v863 = vunpack.c.l.b16 %v845
  %v864 = vunpack.c.l.b16 %v846
  %v865 = vunpack.c.l.b16 %v847
  %v866 = vunpack.c.l.b16 %v848
  %v867 = vpack.c.b16 %v860, %v859
  %v868 = vpack.c.b16 %v862, %v861
  %v869 = vpack.c.b16 %v864, %v863
  %v870 = vpack.c.b16 %v866, %v865
  %v872 = vsel %vm72, %v867, 0
  %v875 = vsel %vm72, %v868, 0
  %v878 = vsel %vm72, %v869, 0
  %v881 = vsel %vm72, %v870, 0
  %v884 = vsel %vm85, %v850, 0
  %886 = vmatprep.subr.bf16.mxu0 0
  %887 = vmatpush1.bf16.msra.mxu0 0
  %888 = vmatprep.subr.bf16.mxu0 0
  %889 = vmatpush1.bf16.msra.mxu0 0
  %890 = vmatprep.subr.bf16.mxu0 0
  %891 = vmatpush1.bf16.msra.mxu0 0
  %892 = vmatprep.subr.bf16.mxu0 0
  %893 = vmatpush1.bf16.msra.mxu0 0
  %894 = vmatprep.subr.bf16.mxu0 0
  %895 = vmatpush1.bf16.msra.mxu0 0
  %896 = vmatprep.subr.bf16.mxu0 0
  %897 = vmatpush1.bf16.msra.mxu0 0
  %898 = vmatprep.subr.bf16.mxu0 0
  %899 = vmatpush1.bf16.msra.mxu0 0
  %900 = vmatprep.subr.bf16.mxu0 0
  %901 = vmatpush1.bf16.msra.mxu0 %v884
  %902 = vmatprep.subr.bf16.mxu0 0
  %903 = vmatpush2.bf16.msra.mxu0 0
  %904 = vmatprep.subr.bf16.mxu0 0
  %905 = vmatpush2.bf16.msra.mxu0 0
  %906 = vmatprep.subr.bf16.mxu0 0
  %907 = vmatpush2.bf16.msra.mxu0 0
  %908 = vmatprep.subr.bf16.mxu0 0
  %909 = vmatpush2.bf16.msra.mxu0 0
  %910 = vmatprep.subr.bf16.mxu0 0
  %911 = vmatpush2.bf16.msra.mxu0 0
  %912 = vmatprep.subr.bf16.mxu0 0
  %913 = vmatpush2.bf16.msra.mxu0 0
  %914 = vmatprep.subr.bf16.mxu0 0
  %915 = vmatpush2.bf16.msra.mxu0 0
  %916 = vmatprep.subr.bf16.mxu0 0
  %917 = vmatpush2.bf16.msra.mxu0 0
  %918 = vmatprep.mubr.bf16.mxu0 0
  %919 = vmatmul.mubr.bf16.gmra.mxu0 %v872
  %v920 = vpop.f32.mrf.mxu0
  %v921 = vadd.f32 0.0, %v920
  %v922 = vpop.f32.mrf.mxu0
  %v923 = vpop.f32.mrf.mxu0
  %v924 = vadd.f32 0.0, %v923
  %v925 = vpop.f32.mrf.mxu0
  %926 = vmatprep.mubr.bf16.mxu0 0
  %927 = vmatmul.mubr.bf16.gmra.mxu0 %v875
  %v928 = vpop.f32.mrf.mxu0
  %v929 = vadd.f32 0.0, %v928
  %v930 = vpop.f32.mrf.mxu0
  %v931 = vpop.f32.mrf.mxu0
  %v932 = vadd.f32 0.0, %v931
  %v933 = vpop.f32.mrf.mxu0
  %934 = vmatprep.mubr.bf16.mxu0 0
  %935 = vmatmul.mubr.bf16.gmra.mxu0 %v878
  %v936 = vpop.f32.mrf.mxu0
  %v937 = vadd.f32 0.0, %v936
  %v938 = vpop.f32.mrf.mxu0
  %v939 = vpop.f32.mrf.mxu0
  %v940 = vadd.f32 0.0, %v939
  %v941 = vpop.f32.mrf.mxu0
  %942 = vmatprep.mubr.bf16.mxu0 0
  %943 = vmatmul.mubr.bf16.gmra.mxu0 %v881
  %v944 = vpop.f32.mrf.mxu0
  %v945 = vadd.f32 0.0, %v944
  %v946 = vpop.f32.mrf.mxu0
  %v947 = vpop.f32.mrf.mxu0
  %v948 = vadd.f32 0.0, %v947
  %v949 = vpop.f32.mrf.mxu0
  %950 = vdwg.mxu0
  %v951 = vadd.f32 %v830, %v921
  %v952 = vadd.f32 %v831, %v924
  %v953 = vadd.f32 %v832, %v929
  %v954 = vadd.f32 %v833, %v932
  %v955 = vadd.f32 %v834, %v937
  %v956 = vadd.f32 %v835, %v940
  %v957 = vadd.f32 %v836, %v945
  %v958 = vadd.f32 %v837, %v948
  %v959 = vld [vmem:[%s719] sm:$0xf]
  %v960 = vld [vmem:[%s719 + $0x4] sm:$0x1]
  %v961 = vld [vmem:[%s719 + $0x8] sm:$0xf]
  %v962 = vld [vmem:[%s719 + $0xc] sm:$0x1]
  %v963 = vld [vmem:[%s719 + $0x10] sm:$0xf]
  %v964 = vld [vmem:[%s719 + $0x14] sm:$0x1]
  %v965 = vld [vmem:[%s719 + $0x18] sm:$0xf]
  %v966 = vld [vmem:[%s719 + $0x1c] sm:$0x1]
  %v967 = vld [vmem:[%s719 + $0x20] sm:$0xf]
  %v968 = vld [vmem:[%s719 + $0x24] sm:$0x1]
  %v969 = vld [vmem:[%s719 + $0x28] sm:$0xf]
  %v970 = vld [vmem:[%s719 + $0x2c] sm:$0x1]
  %v971 = vld [vmem:[%s719 + $0x30] sm:$0xf]
  %v972 = vld [vmem:[%s719 + $0x34] sm:$0x1]
  %v973 = vld [vmem:[%s719 + $0x38] sm:$0xf]
  %v974 = vld [vmem:[%s719 + $0x3c] sm:$0x1]
  %v976 = vshrl.u32 %v959, 16
  %v978 = vrot.slane %v976, 4
  %v979 = vshll.u32 %v959, 16
  %v981 = vrot.slane %v979, 5
  %v982 = vor.u32 %v978, %v981
  %v983 = vrot.slane %v982, 4
  %v985 = vshll.u32 %v960, 16
  %v987 = vrot.slane %v985, 5
  %v988 = vsel %vm272, %v983, %v987
  %v990 = vshrl.u32 %v961, 16
  %v992 = vrot.slane %v990, 4
  %v993 = vshll.u32 %v961, 16
  %v995 = vrot.slane %v993, 5
  %v996 = vor.u32 %v992, %v995
  %v997 = vrot.slane %v996, 4
  %v999 = vshll.u32 %v962, 16
  %v1001 = vrot.slane %v999, 5
  %v1002 = vsel %vm272, %v997, %v1001
  %v1004 = vshrl.u32 %v963, 16
  %v1006 = vrot.slane %v1004, 4
  %v1007 = vshll.u32 %v963, 16
  %v1009 = vrot.slane %v1007, 5
  %v1010 = vor.u32 %v1006, %v1009
  %v1011 = vrot.slane %v1010, 4
  %v1013 = vshll.u32 %v964, 16
  %v1015 = vrot.slane %v1013, 5
  %v1016 = vsel %vm272, %v1011, %v1015
  %v1018 = vshrl.u32 %v965, 16
  %v1020 = vrot.slane %v1018, 4
  %v1021 = vshll.u32 %v965, 16
  %v1023 = vrot.slane %v1021, 5
  %v1024 = vor.u32 %v1020, %v1023
  %v1025 = vrot.slane %v1024, 4
  %v1027 = vshll.u32 %v966, 16
  %v1029 = vrot.slane %v1027, 5
  %v1030 = vsel %vm272, %v1025, %v1029
  %v1032 = vshrl.u32 %v967, 16
  %v1034 = vrot.slane %v1032, 4
  %v1035 = vshll.u32 %v967, 16
  %v1037 = vrot.slane %v1035, 5
  %v1038 = vor.u32 %v1034, %v1037
  %v1039 = vrot.slane %v1038, 4
  %v1041 = vshll.u32 %v968, 16
  %v1043 = vrot.slane %v1041, 5
  %v1044 = vsel %vm272, %v1039, %v1043
  %v1046 = vshrl.u32 %v969, 16
  %v1048 = vrot.slane %v1046, 4
  %v1049 = vshll.u32 %v969, 16
  %v1051 = vrot.slane %v1049, 5
  %v1052 = vor.u32 %v1048, %v1051
  %v1053 = vrot.slane %v1052, 4
  %v1055 = vshll.u32 %v970, 16
  %v1057 = vrot.slane %v1055, 5
  %v1058 = vsel %vm272, %v1053, %v1057
  %v1060 = vshrl.u32 %v971, 16
  %v1062 = vrot.slane %v1060, 4
  %v1063 = vshll.u32 %v971, 16
  %v1065 = vrot.slane %v1063, 5
  %v1066 = vor.u32 %v1062, %v1065
  %v1067 = vrot.slane %v1066, 4
  %v1069 = vshll.u32 %v972, 16
  %v1071 = vrot.slane %v1069, 5
  %v1072 = vsel %vm272, %v1067, %v1071
  %v1074 = vshrl.u32 %v973, 16
  %v1076 = vrot.slane %v1074, 4
  %v1077 = vshll.u32 %v973, 16
  %v1079 = vrot.slane %v1077, 5
  %v1080 = vor.u32 %v1076, %v1079
  %v1081 = vrot.slane %v1080, 4
  %v1083 = vshll.u32 %v974, 16
  %v1085 = vrot.slane %v1083, 5
  %v1086 = vsel %vm272, %v1081, %v1085
  %s1087 = scalar_lea.vmem %s1, 24
  %v1088 = vld [vmem:[%s1087] sm:$0xf]
  %v1089 = vunpack.c.l.b16 %v988
  %v1090 = vunpack.c.l.b16 %v1002
  %v1091 = vunpack.c.l.b16 %v1016
  %v1092 = vunpack.c.l.b16 %v1030
  %v1093 = vunpack.c.l.b16 %v1044
  %v1094 = vunpack.c.l.b16 %v1058
  %v1095 = vunpack.c.l.b16 %v1072
  %v1096 = vunpack.c.l.b16 %v1086
  %v1097 = vpack.c.b16 %v1090, %v1089
  %v1098 = vpack.c.b16 %v1092, %v1091
  %v1099 = vpack.c.b16 %v1094, %v1093
  %v1100 = vpack.c.b16 %v1096, %v1095
  %v1102 = vsel %vm72, %v1097, 0
  %v1105 = vsel %vm72, %v1098, 0
  %v1108 = vsel %vm72, %v1099, 0
  %v1111 = vsel %vm72, %v1100, 0
  %v1114 = vsel %vm85, %v1088, 0
  %1116 = vmatprep.subr.bf16.mxu0 0
  %1117 = vmatpush1.bf16.msra.mxu0 0
  %1118 = vmatprep.subr.bf16.mxu0 0
  %1119 = vmatpush1.bf16.msra.mxu0 0
  %1120 = vmatprep.subr.bf16.mxu0 0
  %1121 = vmatpush1.bf16.msra.mxu0 0
  %1122 = vmatprep.subr.bf16.mxu0 0
  %1123 = vmatpush1.bf16.msra.mxu0 0
  %1124 = vmatprep.subr.bf16.mxu0 0
  %1125 = vmatpush1.bf16.msra.mxu0 0
  %1126 = vmatprep.subr.bf16.mxu0 0
  %1127 = vmatpush1.bf16.msra.mxu0 0
  %1128 = vmatprep.subr.bf16.mxu0 0
  %1129 = vmatpush1.bf16.msra.mxu0 0
  %1130 = vmatprep.subr.bf16.mxu0 0
  %1131 = vmatpush1.bf16.msra.mxu0 %v1114
  %1132 = vmatprep.subr.bf16.mxu0 0
  %1133 = vmatpush2.bf16.msra.mxu0 0
  %1134 = vmatprep.subr.bf16.mxu0 0
  %1135 = vmatpush2.bf16.msra.mxu0 0
  %1136 = vmatprep.subr.bf16.mxu0 0
  %1137 = vmatpush2.bf16.msra.mxu0 0
  %1138 = vmatprep.subr.bf16.mxu0 0
  %1139 = vmatpush2.bf16.msra.mxu0 0
  %1140 = vmatprep.subr.bf16.mxu0 0
  %1141 = vmatpush2.bf16.msra.mxu0 0
  %1142 = vmatprep.subr.bf16.mxu0 0
  %1143 = vmatpush2.bf16.msra.mxu0 0
  %1144 = vmatprep.subr.bf16.mxu0 0
  %1145 = vmatpush2.bf16.msra.mxu0 0
  %1146 = vmatprep.subr.bf16.mxu0 0
  %1147 = vmatpush2.bf16.msra.mxu0 0
  %1148 = vmatprep.mubr.bf16.mxu0 0
  %1149 = vmatmul.mubr.bf16.gmra.mxu0 %v1102
  %v1150 = vpop.f32.mrf.mxu0
  %v1151 = vadd.f32 0.0, %v1150
  %v1152 = vpop.f32.mrf.mxu0
  %v1153 = vpop.f32.mrf.mxu0
  %v1154 = vadd.f32 0.0, %v1153
  %v1155 = vpop.f32.mrf.mxu0
  %1156 = vmatprep.mubr.bf16.mxu0 0
  %1157 = vmatmul.mubr.bf16.gmra.mxu0 %v1105
  %v1158 = vpop.f32.mrf.mxu0
  %v1159 = vadd.f32 0.0, %v1158
  %v1160 = vpop.f32.mrf.mxu0
  %v1161 = vpop.f32.mrf.mxu0
  %v1162 = vadd.f32 0.0, %v1161
  %v1163 = vpop.f32.mrf.mxu0
  %1164 = vmatprep.mubr.bf16.mxu0 0
  %1165 = vmatmul.mubr.bf16.gmra.mxu0 %v1108
  %v1166 = vpop.f32.mrf.mxu0
  %v1167 = vadd.f32 0.0, %v1166
  %v1168 = vpop.f32.mrf.mxu0
  %v1169 = vpop.f32.mrf.mxu0
  %v1170 = vadd.f32 0.0, %v1169
  %v1171 = vpop.f32.mrf.mxu0
  %1172 = vmatprep.mubr.bf16.mxu0 0
  %1173 = vmatmul.mubr.bf16.gmra.mxu0 %v1111
  %v1174 = vpop.f32.mrf.mxu0
  %v1175 = vadd.f32 0.0, %v1174
  %v1176 = vpop.f32.mrf.mxu0
  %v1177 = vpop.f32.mrf.mxu0
  %v1178 = vadd.f32 0.0, %v1177
  %v1179 = vpop.f32.mrf.mxu0
  %1180 = vdwg.mxu0
  %v1181 = vadd.f32 %v951, %v1151
  %v1182 = vadd.f32 %v952, %v1154
  %v1183 = vadd.f32 %v953, %v1159
  %v1184 = vadd.f32 %v954, %v1162
  %v1185 = vadd.f32 %v955, %v1167
  %v1186 = vadd.f32 %v956, %v1170
  %v1187 = vadd.f32 %v957, %v1175
  %v1188 = vadd.f32 %v958, %v1178
  %v1189 = vld [vmem:[%s840] sm:$0xf]
  %v1190 = vld [vmem:[%s840 + $0x4] sm:$0x1]
  %v1191 = vld [vmem:[%s840 + $0x8] sm:$0xf]
  %v1192 = vld [vmem:[%s840 + $0xc] sm:$0x1]
  %v1193 = vld [vmem:[%s840 + $0x10] sm:$0xf]
  %v1194 = vld [vmem:[%s840 + $0x14] sm:$0x1]
  %v1195 = vld [vmem:[%s840 + $0x18] sm:$0xf]
  %v1196 = vld [vmem:[%s840 + $0x1c] sm:$0x1]
  %v1197 = vld [vmem:[%s840 + $0x20] sm:$0xf]
  %v1198 = vld [vmem:[%s840 + $0x24] sm:$0x1]
  %v1199 = vld [vmem:[%s840 + $0x28] sm:$0xf]
  %v1200 = vld [vmem:[%s840 + $0x2c] sm:$0x1]
  %v1201 = vld [vmem:[%s840 + $0x30] sm:$0xf]
  %v1202 = vld [vmem:[%s840 + $0x34] sm:$0x1]
  %v1203 = vld [vmem:[%s840 + $0x38] sm:$0xf]
  %v1204 = vld [vmem:[%s840 + $0x3c] sm:$0x1]
  %v1206 = vshrl.u32 %v1189, 16
  %v1208 = vrot.slane %v1206, 4
  %v1209 = vshll.u32 %v1189, 16
  %v1211 = vrot.slane %v1209, 5
  %v1212 = vor.u32 %v1208, %v1211
  %v1213 = vrot.slane %v1212, 4
  %v1215 = vshll.u32 %v1190, 16
  %v1217 = vrot.slane %v1215, 5
  %v1218 = vsel %vm272, %v1213, %v1217
  %v1220 = vshrl.u32 %v1191, 16
  %v1222 = vrot.slane %v1220, 4
  %v1223 = vshll.u32 %v1191, 16
  %v1225 = vrot.slane %v1223, 5
  %v1226 = vor.u32 %v1222, %v1225
  %v1227 = vrot.slane %v1226, 4
  %v1229 = vshll.u32 %v1192, 16
  %v1231 = vrot.slane %v1229, 5
  %v1232 = vsel %vm272, %v1227, %v1231
  %v1234 = vshrl.u32 %v1193, 16
  %v1236 = vrot.slane %v1234, 4
  %v1237 = vshll.u32 %v1193, 16
  %v1239 = vrot.slane %v1237, 5
  %v1240 = vor.u32 %v1236, %v1239
  %v1241 = vrot.slane %v1240, 4
  %v1243 = vshll.u32 %v1194, 16
  %v1245 = vrot.slane %v1243, 5
  %v1246 = vsel %vm272, %v1241, %v1245
  %v1248 = vshrl.u32 %v1195, 16
  %v1250 = vrot.slane %v1248, 4
  %v1251 = vshll.u32 %v1195, 16
  %v1253 = vrot.slane %v1251, 5
  %v1254 = vor.u32 %v1250, %v1253
  %v1255 = vrot.slane %v1254, 4
  %v1257 = vshll.u32 %v1196, 16
  %v1259 = vrot.slane %v1257, 5
  %v1260 = vsel %vm272, %v1255, %v1259
  %v1262 = vshrl.u32 %v1197, 16
  %v1264 = vrot.slane %v1262, 4
  %v1265 = vshll.u32 %v1197, 16
  %v1267 = vrot.slane %v1265, 5
  %v1268 = vor.u32 %v1264, %v1267
  %v1269 = vrot.slane %v1268, 4
  %v1271 = vshll.u32 %v1198, 16
  %v1273 = vrot.slane %v1271, 5
  %v1274 = vsel %vm272, %v1269, %v1273
  %v1276 = vshrl.u32 %v1199, 16
  %v1278 = vrot.slane %v1276, 4
  %v1279 = vshll.u32 %v1199, 16
  %v1281 = vrot.slane %v1279, 5
  %v1282 = vor.u32 %v1278, %v1281
  %v1283 = vrot.slane %v1282, 4
  %v1285 = vshll.u32 %v1200, 16
  %v1287 = vrot.slane %v1285, 5
  %v1288 = vsel %vm272, %v1283, %v1287
  %v1290 = vshrl.u32 %v1201, 16
  %v1292 = vrot.slane %v1290, 4
  %v1293 = vshll.u32 %v1201, 16
  %v1295 = vrot.slane %v1293, 5
  %v1296 = vor.u32 %v1292, %v1295
  %v1297 = vrot.slane %v1296, 4
  %v1299 = vshll.u32 %v1202, 16
  %v1301 = vrot.slane %v1299, 5
  %v1302 = vsel %vm272, %v1297, %v1301
  %v1304 = vshrl.u32 %v1203, 16
  %v1306 = vrot.slane %v1304, 4
  %v1307 = vshll.u32 %v1203, 16
  %v1309 = vrot.slane %v1307, 5
  %v1310 = vor.u32 %v1306, %v1309
  %v1311 = vrot.slane %v1310, 4
  %v1313 = vshll.u32 %v1204, 16
  %v1315 = vrot.slane %v1313, 5
  %v1316 = vsel %vm272, %v1311, %v1315
  %s1317 = scalar_lea.vmem %s1, 28
  %v1318 = vld [vmem:[%s1317] sm:$0xf]
  %v1319 = vunpack.c.l.b16 %v1218
  %v1320 = vunpack.c.l.b16 %v1232
  %v1321 = vunpack.c.l.b16 %v1246
  %v1322 = vunpack.c.l.b16 %v1260
  %v1323 = vunpack.c.l.b16 %v1274
  %v1324 = vunpack.c.l.b16 %v1288
  %v1325 = vunpack.c.l.b16 %v1302
  %v1326 = vunpack.c.l.b16 %v1316
  %v1327 = vpack.c.b16 %v1320, %v1319
  %v1328 = vpack.c.b16 %v1322, %v1321
  %v1329 = vpack.c.b16 %v1324, %v1323
  %v1330 = vpack.c.b16 %v1326, %v1325
  %v1332 = vsel %vm72, %v1327, 0
  %v1335 = vsel %vm72, %v1328, 0
  %v1338 = vsel %vm72, %v1329, 0
  %v1341 = vsel %vm72, %v1330, 0
  %v1344 = vsel %vm85, %v1318, 0
  %1346 = vmatprep.subr.bf16.mxu0 0
  %1347 = vmatpush1.bf16.msra.mxu0 0
  %1348 = vmatprep.subr.bf16.mxu0 0
  %1349 = vmatpush1.bf16.msra.mxu0 0
  %1350 = vmatprep.subr.bf16.mxu0 0
  %1351 = vmatpush1.bf16.msra.mxu0 0
  %1352 = vmatprep.subr.bf16.mxu0 0
  %1353 = vmatpush1.bf16.msra.mxu0 0
  %1354 = vmatprep.subr.bf16.mxu0 0
  %1355 = vmatpush1.bf16.msra.mxu0 0
  %1356 = vmatprep.subr.bf16.mxu0 0
  %1357 = vmatpush1.bf16.msra.mxu0 0
  %1358 = vmatprep.subr.bf16.mxu0 0
  %1359 = vmatpush1.bf16.msra.mxu0 0
  %1360 = vmatprep.subr.bf16.mxu0 0
  %1361 = vmatpush1.bf16.msra.mxu0 %v1344
  %1362 = vmatprep.subr.bf16.mxu0 0
  %1363 = vmatpush2.bf16.msra.mxu0 0
  %1364 = vmatprep.subr.bf16.mxu0 0
  %1365 = vmatpush2.bf16.msra.mxu0 0
  %1366 = vmatprep.subr.bf16.mxu0 0
  %1367 = vmatpush2.bf16.msra.mxu0 0
  %1368 = vmatprep.subr.bf16.mxu0 0
  %1369 = vmatpush2.bf16.msra.mxu0 0
  %1370 = vmatprep.subr.bf16.mxu0 0
  %1371 = vmatpush2.bf16.msra.mxu0 0
  %1372 = vmatprep.subr.bf16.mxu0 0
  %1373 = vmatpush2.bf16.msra.mxu0 0
  %1374 = vmatprep.subr.bf16.mxu0 0
  %1375 = vmatpush2.bf16.msra.mxu0 0
  %1376 = vmatprep.subr.bf16.mxu0 0
  %1377 = vmatpush2.bf16.msra.mxu0 0
  %1378 = vmatprep.mubr.bf16.mxu0 0
  %1379 = vmatmul.mubr.bf16.gmra.mxu0 %v1332
  %v1380 = vpop.f32.mrf.mxu0
  %v1381 = vadd.f32 0.0, %v1380
  %v1382 = vpop.f32.mrf.mxu0
  %v1383 = vpop.f32.mrf.mxu0
  %v1384 = vadd.f32 0.0, %v1383
  %v1385 = vpop.f32.mrf.mxu0
  %1386 = vmatprep.mubr.bf16.mxu0 0
  %1387 = vmatmul.mubr.bf16.gmra.mxu0 %v1335
  %v1388 = vpop.f32.mrf.mxu0
  %v1389 = vadd.f32 0.0, %v1388
  %v1390 = vpop.f32.mrf.mxu0
  %v1391 = vpop.f32.mrf.mxu0
  %v1392 = vadd.f32 0.0, %v1391
  %v1393 = vpop.f32.mrf.mxu0
  %1394 = vmatprep.mubr.bf16.mxu0 0
  %1395 = vmatmul.mubr.bf16.gmra.mxu0 %v1338
  %v1396 = vpop.f32.mrf.mxu0
  %v1397 = vadd.f32 0.0, %v1396
  %v1398 = vpop.f32.mrf.mxu0
  %v1399 = vpop.f32.mrf.mxu0
  %v1400 = vadd.f32 0.0, %v1399
  %v1401 = vpop.f32.mrf.mxu0
  %1402 = vmatprep.mubr.bf16.mxu0 0
  %1403 = vmatmul.mubr.bf16.gmra.mxu0 %v1341
  %v1404 = vpop.f32.mrf.mxu0
  %v1405 = vadd.f32 0.0, %v1404
  %v1406 = vpop.f32.mrf.mxu0
  %v1407 = vpop.f32.mrf.mxu0
  %v1408 = vadd.f32 0.0, %v1407
  %v1409 = vpop.f32.mrf.mxu0
  %1410 = vdwg.mxu0
  %v1411 = vadd.f32 %v1181, %v1381
  %v1412 = vadd.f32 %v1182, %v1384
  %v1413 = vadd.f32 %v1183, %v1389
  %v1414 = vadd.f32 %v1184, %v1392
  %v1415 = vadd.f32 %v1185, %v1397
  %v1416 = vadd.f32 %v1186, %v1400
  %v1417 = vadd.f32 %v1187, %v1405
  %v1418 = vadd.f32 %v1188, %v1408
  %s1419 = sadd.s32 %s26, 1
  %s1420 = smul.u32 %s1419, 2
  %s1421 = smul.addr %s1420, 4
  %s1422 = scalar_lea.vmem %s0, %s1421
  %v1423 = vld [vmem:[%s1422] sm:$0xf]
  %v1424 = vld [vmem:[%s1422 + $0x8] sm:$0xf]
  %v1425 = vld [vmem:[%s1422 + $0x10] sm:$0xf]
  %v1426 = vld [vmem:[%s1422 + $0x18] sm:$0xf]
  %v1427 = vld [vmem:[%s1422 + $0x20] sm:$0xf]
  %v1428 = vld [vmem:[%s1422 + $0x28] sm:$0xf]
  %v1429 = vld [vmem:[%s1422 + $0x30] sm:$0xf]
  %v1430 = vld [vmem:[%s1422 + $0x38] sm:$0xf]
  %s1431 = scalar_lea.vmem %s1, 32
  %v1432 = vld [vmem:[%s1431] sm:$0xf]
  %v1441 = vunpack.c.l.b16 %v1423
  %v1442 = vunpack.c.l.b16 %v1424
  %v1443 = vunpack.c.l.b16 %v1425
  %v1444 = vunpack.c.l.b16 %v1426
  %v1445 = vunpack.c.l.b16 %v1427
  %v1446 = vunpack.c.l.b16 %v1428
  %v1447 = vunpack.c.l.b16 %v1429
  %v1448 = vunpack.c.l.b16 %v1430
  %v1449 = vpack.c.b16 %v1442, %v1441
  %v1450 = vpack.c.b16 %v1444, %v1443
  %v1451 = vpack.c.b16 %v1446, %v1445
  %v1452 = vpack.c.b16 %v1448, %v1447
  %v1454 = vsel %vm72, %v1449, 0
  %v1457 = vsel %vm72, %v1450, 0
  %v1460 = vsel %vm72, %v1451, 0
  %v1463 = vsel %vm72, %v1452, 0
  %v1466 = vsel %vm85, %v1432, 0
  %1468 = vmatprep.subr.bf16.mxu0 0
  %1469 = vmatpush1.bf16.msra.mxu0 0
  %1470 = vmatprep.subr.bf16.mxu0 0
  %1471 = vmatpush1.bf16.msra.mxu0 0
  %1472 = vmatprep.subr.bf16.mxu0 0
  %1473 = vmatpush1.bf16.msra.mxu0 0
  %1474 = vmatprep.subr.bf16.mxu0 0
  %1475 = vmatpush1.bf16.msra.mxu0 0
  %1476 = vmatprep.subr.bf16.mxu0 0
  %1477 = vmatpush1.bf16.msra.mxu0 0
  %1478 = vmatprep.subr.bf16.mxu0 0
  %1479 = vmatpush1.bf16.msra.mxu0 0
  %1480 = vmatprep.subr.bf16.mxu0 0
  %1481 = vmatpush1.bf16.msra.mxu0 0
  %1482 = vmatprep.subr.bf16.mxu0 0
  %1483 = vmatpush1.bf16.msra.mxu0 %v1466
  %1484 = vmatprep.subr.bf16.mxu0 0
  %1485 = vmatpush2.bf16.msra.mxu0 0
  %1486 = vmatprep.subr.bf16.mxu0 0
  %1487 = vmatpush2.bf16.msra.mxu0 0
  %1488 = vmatprep.subr.bf16.mxu0 0
  %1489 = vmatpush2.bf16.msra.mxu0 0
  %1490 = vmatprep.subr.bf16.mxu0 0
  %1491 = vmatpush2.bf16.msra.mxu0 0
  %1492 = vmatprep.subr.bf16.mxu0 0
  %1493 = vmatpush2.bf16.msra.mxu0 0
  %1494 = vmatprep.subr.bf16.mxu0 0
  %1495 = vmatpush2.bf16.msra.mxu0 0
  %1496 = vmatprep.subr.bf16.mxu0 0
  %1497 = vmatpush2.bf16.msra.mxu0 0
  %1498 = vmatprep.subr.bf16.mxu0 0
  %1499 = vmatpush2.bf16.msra.mxu0 0
  %1500 = vmatprep.mubr.bf16.mxu0 0
  %1501 = vmatmul.mubr.bf16.gmra.mxu0 %v1454
  %v1502 = vpop.f32.mrf.mxu0
  %v1503 = vadd.f32 0.0, %v1502
  %v1504 = vpop.f32.mrf.mxu0
  %v1505 = vpop.f32.mrf.mxu0
  %v1506 = vadd.f32 0.0, %v1505
  %v1507 = vpop.f32.mrf.mxu0
  %1508 = vmatprep.mubr.bf16.mxu0 0
  %1509 = vmatmul.mubr.bf16.gmra.mxu0 %v1457
  %v1510 = vpop.f32.mrf.mxu0
  %v1511 = vadd.f32 0.0, %v1510
  %v1512 = vpop.f32.mrf.mxu0
  %v1513 = vpop.f32.mrf.mxu0
  %v1514 = vadd.f32 0.0, %v1513
  %v1515 = vpop.f32.mrf.mxu0
  %1516 = vmatprep.mubr.bf16.mxu0 0
  %1517 = vmatmul.mubr.bf16.gmra.mxu0 %v1460
  %v1518 = vpop.f32.mrf.mxu0
  %v1519 = vadd.f32 0.0, %v1518
  %v1520 = vpop.f32.mrf.mxu0
  %v1521 = vpop.f32.mrf.mxu0
  %v1522 = vadd.f32 0.0, %v1521
  %v1523 = vpop.f32.mrf.mxu0
  %1524 = vmatprep.mubr.bf16.mxu0 0
  %1525 = vmatmul.mubr.bf16.gmra.mxu0 %v1463
  %v1526 = vpop.f32.mrf.mxu0
  %v1527 = vadd.f32 0.0, %v1526
  %v1528 = vpop.f32.mrf.mxu0
  %v1529 = vpop.f32.mrf.mxu0
  %v1530 = vadd.f32 0.0, %v1529
  %v1531 = vpop.f32.mrf.mxu0
  %1532 = vdwg.mxu0
  %v1533 = vadd.f32 %v1411, %v1503
  %v1534 = vadd.f32 %v1412, %v1506
  %v1535 = vadd.f32 %v1413, %v1511
  %v1536 = vadd.f32 %v1414, %v1514
  %v1537 = vadd.f32 %v1415, %v1519
  %v1538 = vadd.f32 %v1416, %v1522
  %v1539 = vadd.f32 %v1417, %v1527
  %v1540 = vadd.f32 %v1418, %v1530
  %s1541 = sadd.s32 %s1420, 18
  %s1542 = smul.addr %s1541, 4
  %s1543 = scalar_lea.vmem %s0, %s1542
  %v1544 = vld [vmem:[%s1543] sm:$0xf]
  %v1545 = vld [vmem:[%s1543 + $0x8] sm:$0xf]
  %v1546 = vld [vmem:[%s1543 + $0x10] sm:$0xf]
  %v1547 = vld [vmem:[%s1543 + $0x18] sm:$0xf]
  %v1548 = vld [vmem:[%s1543 + $0x20] sm:$0xf]
  %v1549 = vld [vmem:[%s1543 + $0x28] sm:$0xf]
  %v1550 = vld [vmem:[%s1543 + $0x30] sm:$0xf]
  %v1551 = vld [vmem:[%s1543 + $0x38] sm:$0xf]
  %s1552 = scalar_lea.vmem %s1, 36
  %v1553 = vld [vmem:[%s1552] sm:$0xf]
  %v1562 = vunpack.c.l.b16 %v1544
  %v1563 = vunpack.c.l.b16 %v1545
  %v1564 = vunpack.c.l.b16 %v1546
  %v1565 = vunpack.c.l.b16 %v1547
  %v1566 = vunpack.c.l.b16 %v1548
  %v1567 = vunpack.c.l.b16 %v1549
  %v1568 = vunpack.c.l.b16 %v1550
  %v1569 = vunpack.c.l.b16 %v1551
  %v1570 = vpack.c.b16 %v1563, %v1562
  %v1571 = vpack.c.b16 %v1565, %v1564
  %v1572 = vpack.c.b16 %v1567, %v1566
  %v1573 = vpack.c.b16 %v1569, %v1568
  %v1575 = vsel %vm72, %v1570, 0
  %v1578 = vsel %vm72, %v1571, 0
  %v1581 = vsel %vm72, %v1572, 0
  %v1584 = vsel %vm72, %v1573, 0
  %v1587 = vsel %vm85, %v1553, 0
  %1589 = vmatprep.subr.bf16.mxu0 0
  %1590 = vmatpush1.bf16.msra.mxu0 0
  %1591 = vmatprep.subr.bf16.mxu0 0
  %1592 = vmatpush1.bf16.msra.mxu0 0
  %1593 = vmatprep.subr.bf16.mxu0 0
  %1594 = vmatpush1.bf16.msra.mxu0 0
  %1595 = vmatprep.subr.bf16.mxu0 0
  %1596 = vmatpush1.bf16.msra.mxu0 0
  %1597 = vmatprep.subr.bf16.mxu0 0
  %1598 = vmatpush1.bf16.msra.mxu0 0
  %1599 = vmatprep.subr.bf16.mxu0 0
  %1600 = vmatpush1.bf16.msra.mxu0 0
  %1601 = vmatprep.subr.bf16.mxu0 0
  %1602 = vmatpush1.bf16.msra.mxu0 0
  %1603 = vmatprep.subr.bf16.mxu0 0
  %1604 = vmatpush1.bf16.msra.mxu0 %v1587
  %1605 = vmatprep.subr.bf16.mxu0 0
  %1606 = vmatpush2.bf16.msra.mxu0 0
  %1607 = vmatprep.subr.bf16.mxu0 0
  %1608 = vmatpush2.bf16.msra.mxu0 0
  %1609 = vmatprep.subr.bf16.mxu0 0
  %1610 = vmatpush2.bf16.msra.mxu0 0
  %1611 = vmatprep.subr.bf16.mxu0 0
  %1612 = vmatpush2.bf16.msra.mxu0 0
  %1613 = vmatprep.subr.bf16.mxu0 0
  %1614 = vmatpush2.bf16.msra.mxu0 0
  %1615 = vmatprep.subr.bf16.mxu0 0
  %1616 = vmatpush2.bf16.msra.mxu0 0
  %1617 = vmatprep.subr.bf16.mxu0 0
  %1618 = vmatpush2.bf16.msra.mxu0 0
  %1619 = vmatprep.subr.bf16.mxu0 0
  %1620 = vmatpush2.bf16.msra.mxu0 0
  %1621 = vmatprep.mubr.bf16.mxu0 0
  %1622 = vmatmul.mubr.bf16.gmra.mxu0 %v1575
  %v1623 = vpop.f32.mrf.mxu0
  %v1624 = vadd.f32 0.0, %v1623
  %v1625 = vpop.f32.mrf.mxu0
  %v1626 = vpop.f32.mrf.mxu0
  %v1627 = vadd.f32 0.0, %v1626
  %v1628 = vpop.f32.mrf.mxu0
  %1629 = vmatprep.mubr.bf16.mxu0 0
  %1630 = vmatmul.mubr.bf16.gmra.mxu0 %v1578
  %v1631 = vpop.f32.mrf.mxu0
  %v1632 = vadd.f32 0.0, %v1631
  %v1633 = vpop.f32.mrf.mxu0
  %v1634 = vpop.f32.mrf.mxu0
  %v1635 = vadd.f32 0.0, %v1634
  %v1636 = vpop.f32.mrf.mxu0
  %1637 = vmatprep.mubr.bf16.mxu0 0
  %1638 = vmatmul.mubr.bf16.gmra.mxu0 %v1581
  %v1639 = vpop.f32.mrf.mxu0
  %v1640 = vadd.f32 0.0, %v1639
  %v1641 = vpop.f32.mrf.mxu0
  %v1642 = vpop.f32.mrf.mxu0
  %v1643 = vadd.f32 0.0, %v1642
  %v1644 = vpop.f32.mrf.mxu0
  %1645 = vmatprep.mubr.bf16.mxu0 0
  %1646 = vmatmul.mubr.bf16.gmra.mxu0 %v1584
  %v1647 = vpop.f32.mrf.mxu0
  %v1648 = vadd.f32 0.0, %v1647
  %v1649 = vpop.f32.mrf.mxu0
  %v1650 = vpop.f32.mrf.mxu0
  %v1651 = vadd.f32 0.0, %v1650
  %v1652 = vpop.f32.mrf.mxu0
  %1653 = vdwg.mxu0
  %v1654 = vadd.f32 %v1533, %v1624
  %v1655 = vadd.f32 %v1534, %v1627
  %v1656 = vadd.f32 %v1535, %v1632
  %v1657 = vadd.f32 %v1536, %v1635
  %v1658 = vadd.f32 %v1537, %v1640
  %v1659 = vadd.f32 %v1538, %v1643
  %v1660 = vadd.f32 %v1539, %v1648
  %v1661 = vadd.f32 %v1540, %v1651
  %v1662 = vld [vmem:[%s1422] sm:$0xf]
  %v1663 = vld [vmem:[%s1422 + $0x4] sm:$0x1]
  %v1664 = vld [vmem:[%s1422 + $0x8] sm:$0xf]
  %v1665 = vld [vmem:[%s1422 + $0xc] sm:$0x1]
  %v1666 = vld [vmem:[%s1422 + $0x10] sm:$0xf]
  %v1667 = vld [vmem:[%s1422 + $0x14] sm:$0x1]
  %v1668 = vld [vmem:[%s1422 + $0x18] sm:$0xf]
  %v1669 = vld [vmem:[%s1422 + $0x1c] sm:$0x1]
  %v1670 = vld [vmem:[%s1422 + $0x20] sm:$0xf]
  %v1671 = vld [vmem:[%s1422 + $0x24] sm:$0x1]
  %v1672 = vld [vmem:[%s1422 + $0x28] sm:$0xf]
  %v1673 = vld [vmem:[%s1422 + $0x2c] sm:$0x1]
  %v1674 = vld [vmem:[%s1422 + $0x30] sm:$0xf]
  %v1675 = vld [vmem:[%s1422 + $0x34] sm:$0x1]
  %v1676 = vld [vmem:[%s1422 + $0x38] sm:$0xf]
  %v1677 = vld [vmem:[%s1422 + $0x3c] sm:$0x1]
  %v1679 = vshrl.u32 %v1662, 16
  %v1681 = vrot.slane %v1679, 4
  %v1682 = vshll.u32 %v1662, 16
  %v1684 = vrot.slane %v1682, 5
  %v1685 = vor.u32 %v1681, %v1684
  %v1686 = vrot.slane %v1685, 4
  %v1688 = vshll.u32 %v1663, 16
  %v1690 = vrot.slane %v1688, 5
  %v1691 = vsel %vm272, %v1686, %v1690
  %v1693 = vshrl.u32 %v1664, 16
  %v1695 = vrot.slane %v1693, 4
  %v1696 = vshll.u32 %v1664, 16
  %v1698 = vrot.slane %v1696, 5
  %v1699 = vor.u32 %v1695, %v1698
  %v1700 = vrot.slane %v1699, 4
  %v1702 = vshll.u32 %v1665, 16
  %v1704 = vrot.slane %v1702, 5
  %v1705 = vsel %vm272, %v1700, %v1704
  %v1707 = vshrl.u32 %v1666, 16
  %v1709 = vrot.slane %v1707, 4
  %v1710 = vshll.u32 %v1666, 16
  %v1712 = vrot.slane %v1710, 5
  %v1713 = vor.u32 %v1709, %v1712
  %v1714 = vrot.slane %v1713, 4
  %v1716 = vshll.u32 %v1667, 16
  %v1718 = vrot.slane %v1716, 5
  %v1719 = vsel %vm272, %v1714, %v1718
  %v1721 = vshrl.u32 %v1668, 16
  %v1723 = vrot.slane %v1721, 4
  %v1724 = vshll.u32 %v1668, 16
  %v1726 = vrot.slane %v1724, 5
  %v1727 = vor.u32 %v1723, %v1726
  %v1728 = vrot.slane %v1727, 4
  %v1730 = vshll.u32 %v1669, 16
  %v1732 = vrot.slane %v1730, 5
  %v1733 = vsel %vm272, %v1728, %v1732
  %v1735 = vshrl.u32 %v1670, 16
  %v1737 = vrot.slane %v1735, 4
  %v1738 = vshll.u32 %v1670, 16
  %v1740 = vrot.slane %v1738, 5
  %v1741 = vor.u32 %v1737, %v1740
  %v1742 = vrot.slane %v1741, 4
  %v1744 = vshll.u32 %v1671, 16
  %v1746 = vrot.slane %v1744, 5
  %v1747 = vsel %vm272, %v1742, %v1746
  %v1749 = vshrl.u32 %v1672, 16
  %v1751 = vrot.slane %v1749, 4
  %v1752 = vshll.u32 %v1672, 16
  %v1754 = vrot.slane %v1752, 5
  %v1755 = vor.u32 %v1751, %v1754
  %v1756 = vrot.slane %v1755, 4
  %v1758 = vshll.u32 %v1673, 16
  %v1760 = vrot.slane %v1758, 5
  %v1761 = vsel %vm272, %v1756, %v1760
  %v1763 = vshrl.u32 %v1674, 16
  %v1765 = vrot.slane %v1763, 4
  %v1766 = vshll.u32 %v1674, 16
  %v1768 = vrot.slane %v1766, 5
  %v1769 = vor.u32 %v1765, %v1768
  %v1770 = vrot.slane %v1769, 4
  %v1772 = vshll.u32 %v1675, 16
  %v1774 = vrot.slane %v1772, 5
  %v1775 = vsel %vm272, %v1770, %v1774
  %v1777 = vshrl.u32 %v1676, 16
  %v1779 = vrot.slane %v1777, 4
  %v1780 = vshll.u32 %v1676, 16
  %v1782 = vrot.slane %v1780, 5
  %v1783 = vor.u32 %v1779, %v1782
  %v1784 = vrot.slane %v1783, 4
  %v1786 = vshll.u32 %v1677, 16
  %v1788 = vrot.slane %v1786, 5
  %v1789 = vsel %vm272, %v1784, %v1788
  %s1790 = scalar_lea.vmem %s1, 40
  %v1791 = vld [vmem:[%s1790] sm:$0xf]
  %v1792 = vunpack.c.l.b16 %v1691
  %v1793 = vunpack.c.l.b16 %v1705
  %v1794 = vunpack.c.l.b16 %v1719
  %v1795 = vunpack.c.l.b16 %v1733
  %v1796 = vunpack.c.l.b16 %v1747
  %v1797 = vunpack.c.l.b16 %v1761
  %v1798 = vunpack.c.l.b16 %v1775
  %v1799 = vunpack.c.l.b16 %v1789
  %v1800 = vpack.c.b16 %v1793, %v1792
  %v1801 = vpack.c.b16 %v1795, %v1794
  %v1802 = vpack.c.b16 %v1797, %v1796
  %v1803 = vpack.c.b16 %v1799, %v1798
  %v1805 = vsel %vm72, %v1800, 0
  %v1808 = vsel %vm72, %v1801, 0
  %v1811 = vsel %vm72, %v1802, 0
  %v1814 = vsel %vm72, %v1803, 0
  %v1817 = vsel %vm85, %v1791, 0
  %1819 = vmatprep.subr.bf16.mxu0 0
  %1820 = vmatpush1.bf16.msra.mxu0 0
  %1821 = vmatprep.subr.bf16.mxu0 0
  %1822 = vmatpush1.bf16.msra.mxu0 0
  %1823 = vmatprep.subr.bf16.mxu0 0
  %1824 = vmatpush1.bf16.msra.mxu0 0
  %1825 = vmatprep.subr.bf16.mxu0 0
  %1826 = vmatpush1.bf16.msra.mxu0 0
  %1827 = vmatprep.subr.bf16.mxu0 0
  %1828 = vmatpush1.bf16.msra.mxu0 0
  %1829 = vmatprep.subr.bf16.mxu0 0
  %1830 = vmatpush1.bf16.msra.mxu0 0
  %1831 = vmatprep.subr.bf16.mxu0 0
  %1832 = vmatpush1.bf16.msra.mxu0 0
  %1833 = vmatprep.subr.bf16.mxu0 0
  %1834 = vmatpush1.bf16.msra.mxu0 %v1817
  %1835 = vmatprep.subr.bf16.mxu0 0
  %1836 = vmatpush2.bf16.msra.mxu0 0
  %1837 = vmatprep.subr.bf16.mxu0 0
  %1838 = vmatpush2.bf16.msra.mxu0 0
  %1839 = vmatprep.subr.bf16.mxu0 0
  %1840 = vmatpush2.bf16.msra.mxu0 0
  %1841 = vmatprep.subr.bf16.mxu0 0
  %1842 = vmatpush2.bf16.msra.mxu0 0
  %1843 = vmatprep.subr.bf16.mxu0 0
  %1844 = vmatpush2.bf16.msra.mxu0 0
  %1845 = vmatprep.subr.bf16.mxu0 0
  %1846 = vmatpush2.bf16.msra.mxu0 0
  %1847 = vmatprep.subr.bf16.mxu0 0
  %1848 = vmatpush2.bf16.msra.mxu0 0
  %1849 = vmatprep.subr.bf16.mxu0 0
  %1850 = vmatpush2.bf16.msra.mxu0 0
  %1851 = vmatprep.mubr.bf16.mxu0 0
  %1852 = vmatmul.mubr.bf16.gmra.mxu0 %v1805
  %v1853 = vpop.f32.mrf.mxu0
  %v1854 = vadd.f32 0.0, %v1853
  %v1855 = vpop.f32.mrf.mxu0
  %v1856 = vpop.f32.mrf.mxu0
  %v1857 = vadd.f32 0.0, %v1856
  %v1858 = vpop.f32.mrf.mxu0
  %1859 = vmatprep.mubr.bf16.mxu0 0
  %1860 = vmatmul.mubr.bf16.gmra.mxu0 %v1808
  %v1861 = vpop.f32.mrf.mxu0
  %v1862 = vadd.f32 0.0, %v1861
  %v1863 = vpop.f32.mrf.mxu0
  %v1864 = vpop.f32.mrf.mxu0
  %v1865 = vadd.f32 0.0, %v1864
  %v1866 = vpop.f32.mrf.mxu0
  %1867 = vmatprep.mubr.bf16.mxu0 0
  %1868 = vmatmul.mubr.bf16.gmra.mxu0 %v1811
  %v1869 = vpop.f32.mrf.mxu0
  %v1870 = vadd.f32 0.0, %v1869
  %v1871 = vpop.f32.mrf.mxu0
  %v1872 = vpop.f32.mrf.mxu0
  %v1873 = vadd.f32 0.0, %v1872
  %v1874 = vpop.f32.mrf.mxu0
  %1875 = vmatprep.mubr.bf16.mxu0 0
  %1876 = vmatmul.mubr.bf16.gmra.mxu0 %v1814
  %v1877 = vpop.f32.mrf.mxu0
  %v1878 = vadd.f32 0.0, %v1877
  %v1879 = vpop.f32.mrf.mxu0
  %v1880 = vpop.f32.mrf.mxu0
  %v1881 = vadd.f32 0.0, %v1880
  %v1882 = vpop.f32.mrf.mxu0
  %1883 = vdwg.mxu0
  %v1884 = vadd.f32 %v1654, %v1854
  %v1885 = vadd.f32 %v1655, %v1857
  %v1886 = vadd.f32 %v1656, %v1862
  %v1887 = vadd.f32 %v1657, %v1865
  %v1888 = vadd.f32 %v1658, %v1870
  %v1889 = vadd.f32 %v1659, %v1873
  %v1890 = vadd.f32 %v1660, %v1878
  %v1891 = vadd.f32 %v1661, %v1881
  %v1892 = vld [vmem:[%s1543] sm:$0xf]
  %v1893 = vld [vmem:[%s1543 + $0x4] sm:$0x1]
  %v1894 = vld [vmem:[%s1543 + $0x8] sm:$0xf]
  %v1895 = vld [vmem:[%s1543 + $0xc] sm:$0x1]
  %v1896 = vld [vmem:[%s1543 + $0x10] sm:$0xf]
  %v1897 = vld [vmem:[%s1543 + $0x14] sm:$0x1]
  %v1898 = vld [vmem:[%s1543 + $0x18] sm:$0xf]
  %v1899 = vld [vmem:[%s1543 + $0x1c] sm:$0x1]
  %v1900 = vld [vmem:[%s1543 + $0x20] sm:$0xf]
  %v1901 = vld [vmem:[%s1543 + $0x24] sm:$0x1]
  %v1902 = vld [vmem:[%s1543 + $0x28] sm:$0xf]
  %v1903 = vld [vmem:[%s1543 + $0x2c] sm:$0x1]
  %v1904 = vld [vmem:[%s1543 + $0x30] sm:$0xf]
  %v1905 = vld [vmem:[%s1543 + $0x34] sm:$0x1]
  %v1906 = vld [vmem:[%s1543 + $0x38] sm:$0xf]
  %v1907 = vld [vmem:[%s1543 + $0x3c] sm:$0x1]
  %v1909 = vshrl.u32 %v1892, 16
  %v1911 = vrot.slane %v1909, 4
  %v1912 = vshll.u32 %v1892, 16
  %v1914 = vrot.slane %v1912, 5
  %v1915 = vor.u32 %v1911, %v1914
  %v1916 = vrot.slane %v1915, 4
  %v1918 = vshll.u32 %v1893, 16
  %v1920 = vrot.slane %v1918, 5
  %v1921 = vsel %vm272, %v1916, %v1920
  %v1923 = vshrl.u32 %v1894, 16
  %v1925 = vrot.slane %v1923, 4
  %v1926 = vshll.u32 %v1894, 16
  %v1928 = vrot.slane %v1926, 5
  %v1929 = vor.u32 %v1925, %v1928
  %v1930 = vrot.slane %v1929, 4
  %v1932 = vshll.u32 %v1895, 16
  %v1934 = vrot.slane %v1932, 5
  %v1935 = vsel %vm272, %v1930, %v1934
  %v1937 = vshrl.u32 %v1896, 16
  %v1939 = vrot.slane %v1937, 4
  %v1940 = vshll.u32 %v1896, 16
  %v1942 = vrot.slane %v1940, 5
  %v1943 = vor.u32 %v1939, %v1942
  %v1944 = vrot.slane %v1943, 4
  %v1946 = vshll.u32 %v1897, 16
  %v1948 = vrot.slane %v1946, 5
  %v1949 = vsel %vm272, %v1944, %v1948
  %v1951 = vshrl.u32 %v1898, 16
  %v1953 = vrot.slane %v1951, 4
  %v1954 = vshll.u32 %v1898, 16
  %v1956 = vrot.slane %v1954, 5
  %v1957 = vor.u32 %v1953, %v1956
  %v1958 = vrot.slane %v1957, 4
  %v1960 = vshll.u32 %v1899, 16
  %v1962 = vrot.slane %v1960, 5
  %v1963 = vsel %vm272, %v1958, %v1962
  %v1965 = vshrl.u32 %v1900, 16
  %v1967 = vrot.slane %v1965, 4
  %v1968 = vshll.u32 %v1900, 16
  %v1970 = vrot.slane %v1968, 5
  %v1971 = vor.u32 %v1967, %v1970
  %v1972 = vrot.slane %v1971, 4
  %v1974 = vshll.u32 %v1901, 16
  %v1976 = vrot.slane %v1974, 5
  %v1977 = vsel %vm272, %v1972, %v1976
  %v1979 = vshrl.u32 %v1902, 16
  %v1981 = vrot.slane %v1979, 4
  %v1982 = vshll.u32 %v1902, 16
  %v1984 = vrot.slane %v1982, 5
  %v1985 = vor.u32 %v1981, %v1984
  %v1986 = vrot.slane %v1985, 4
  %v1988 = vshll.u32 %v1903, 16
  %v1990 = vrot.slane %v1988, 5
  %v1991 = vsel %vm272, %v1986, %v1990
  %v1993 = vshrl.u32 %v1904, 16
  %v1995 = vrot.slane %v1993, 4
  %v1996 = vshll.u32 %v1904, 16
  %v1998 = vrot.slane %v1996, 5
  %v1999 = vor.u32 %v1995, %v1998
  %v2000 = vrot.slane %v1999, 4
  %v2002 = vshll.u32 %v1905, 16
  %v2004 = vrot.slane %v2002, 5
  %v2005 = vsel %vm272, %v2000, %v2004
  %v2007 = vshrl.u32 %v1906, 16
  %v2009 = vrot.slane %v2007, 4
  %v2010 = vshll.u32 %v1906, 16
  %v2012 = vrot.slane %v2010, 5
  %v2013 = vor.u32 %v2009, %v2012
  %v2014 = vrot.slane %v2013, 4
  %v2016 = vshll.u32 %v1907, 16
  %v2018 = vrot.slane %v2016, 5
  %v2019 = vsel %vm272, %v2014, %v2018
  %s2020 = scalar_lea.vmem %s1, 44
  %v2021 = vld [vmem:[%s2020] sm:$0xf]
  %v2022 = vunpack.c.l.b16 %v1921
  %v2023 = vunpack.c.l.b16 %v1935
  %v2024 = vunpack.c.l.b16 %v1949
  %v2025 = vunpack.c.l.b16 %v1963
  %v2026 = vunpack.c.l.b16 %v1977
  %v2027 = vunpack.c.l.b16 %v1991
  %v2028 = vunpack.c.l.b16 %v2005
  %v2029 = vunpack.c.l.b16 %v2019
  %v2030 = vpack.c.b16 %v2023, %v2022
  %v2031 = vpack.c.b16 %v2025, %v2024
  %v2032 = vpack.c.b16 %v2027, %v2026
  %v2033 = vpack.c.b16 %v2029, %v2028
  %v2035 = vsel %vm72, %v2030, 0
  %v2038 = vsel %vm72, %v2031, 0
  %v2041 = vsel %vm72, %v2032, 0
  %v2044 = vsel %vm72, %v2033, 0
  %v2047 = vsel %vm85, %v2021, 0
  %2049 = vmatprep.subr.bf16.mxu0 0
  %2050 = vmatpush1.bf16.msra.mxu0 0
  %2051 = vmatprep.subr.bf16.mxu0 0
  %2052 = vmatpush1.bf16.msra.mxu0 0
  %2053 = vmatprep.subr.bf16.mxu0 0
  %2054 = vmatpush1.bf16.msra.mxu0 0
  %2055 = vmatprep.subr.bf16.mxu0 0
  %2056 = vmatpush1.bf16.msra.mxu0 0
  %2057 = vmatprep.subr.bf16.mxu0 0
  %2058 = vmatpush1.bf16.msra.mxu0 0
  %2059 = vmatprep.subr.bf16.mxu0 0
  %2060 = vmatpush1.bf16.msra.mxu0 0
  %2061 = vmatprep.subr.bf16.mxu0 0
  %2062 = vmatpush1.bf16.msra.mxu0 0
  %2063 = vmatprep.subr.bf16.mxu0 0
  %2064 = vmatpush1.bf16.msra.mxu0 %v2047
  %2065 = vmatprep.subr.bf16.mxu0 0
  %2066 = vmatpush2.bf16.msra.mxu0 0
  %2067 = vmatprep.subr.bf16.mxu0 0
  %2068 = vmatpush2.bf16.msra.mxu0 0
  %2069 = vmatprep.subr.bf16.mxu0 0
  %2070 = vmatpush2.bf16.msra.mxu0 0
  %2071 = vmatprep.subr.bf16.mxu0 0
  %2072 = vmatpush2.bf16.msra.mxu0 0
  %2073 = vmatprep.subr.bf16.mxu0 0
  %2074 = vmatpush2.bf16.msra.mxu0 0
  %2075 = vmatprep.subr.bf16.mxu0 0
  %2076 = vmatpush2.bf16.msra.mxu0 0
  %2077 = vmatprep.subr.bf16.mxu0 0
  %2078 = vmatpush2.bf16.msra.mxu0 0
  %2079 = vmatprep.subr.bf16.mxu0 0
  %2080 = vmatpush2.bf16.msra.mxu0 0
  %2081 = vmatprep.mubr.bf16.mxu0 0
  %2082 = vmatmul.mubr.bf16.gmra.mxu0 %v2035
  %v2083 = vpop.f32.mrf.mxu0
  %v2084 = vadd.f32 0.0, %v2083
  %v2085 = vpop.f32.mrf.mxu0
  %v2086 = vpop.f32.mrf.mxu0
  %v2087 = vadd.f32 0.0, %v2086
  %v2088 = vpop.f32.mrf.mxu0
  %2089 = vmatprep.mubr.bf16.mxu0 0
  %2090 = vmatmul.mubr.bf16.gmra.mxu0 %v2038
  %v2091 = vpop.f32.mrf.mxu0
  %v2092 = vadd.f32 0.0, %v2091
  %v2093 = vpop.f32.mrf.mxu0
  %v2094 = vpop.f32.mrf.mxu0
  %v2095 = vadd.f32 0.0, %v2094
  %v2096 = vpop.f32.mrf.mxu0
  %2097 = vmatprep.mubr.bf16.mxu0 0
  %2098 = vmatmul.mubr.bf16.gmra.mxu0 %v2041
  %v2099 = vpop.f32.mrf.mxu0
  %v2100 = vadd.f32 0.0, %v2099
  %v2101 = vpop.f32.mrf.mxu0
  %v2102 = vpop.f32.mrf.mxu0
  %v2103 = vadd.f32 0.0, %v2102
  %v2104 = vpop.f32.mrf.mxu0
  %2105 = vmatprep.mubr.bf16.mxu0 0
  %2106 = vmatmul.mubr.bf16.gmra.mxu0 %v2044
  %v2107 = vpop.f32.mrf.mxu0
  %v2108 = vadd.f32 0.0, %v2107
  %v2109 = vpop.f32.mrf.mxu0
  %v2110 = vpop.f32.mrf.mxu0
  %v2111 = vadd.f32 0.0, %v2110
  %v2112 = vpop.f32.mrf.mxu0
  %2113 = vdwg.mxu0
  %v2114 = vadd.f32 %v1884, %v2084
  %v2115 = vadd.f32 %v1885, %v2087
  %v2116 = vadd.f32 %v1886, %v2092
  %v2117 = vadd.f32 %v1887, %v2095
  %v2118 = vadd.f32 %v1888, %v2100
  %v2119 = vadd.f32 %v1889, %v2103
  %v2120 = vadd.f32 %v1890, %v2108
  %v2121 = vadd.f32 %v1891, %v2111
  %s2122 = sadd.s32 %s1420, 36
  %s2123 = smul.addr %s2122, 4
  %s2124 = scalar_lea.vmem %s0, %s2123
  %v2125 = vld [vmem:[%s2124] sm:$0xf]
  %v2126 = vld [vmem:[%s2124 + $0x8] sm:$0xf]
  %v2127 = vld [vmem:[%s2124 + $0x10] sm:$0xf]
  %v2128 = vld [vmem:[%s2124 + $0x18] sm:$0xf]
  %v2129 = vld [vmem:[%s2124 + $0x20] sm:$0xf]
  %v2130 = vld [vmem:[%s2124 + $0x28] sm:$0xf]
  %v2131 = vld [vmem:[%s2124 + $0x30] sm:$0xf]
  %v2132 = vld [vmem:[%s2124 + $0x38] sm:$0xf]
  %s2133 = scalar_lea.vmem %s1, 48
  %v2134 = vld [vmem:[%s2133] sm:$0xf]
  %v2143 = vunpack.c.l.b16 %v2125
  %v2144 = vunpack.c.l.b16 %v2126
  %v2145 = vunpack.c.l.b16 %v2127
  %v2146 = vunpack.c.l.b16 %v2128
  %v2147 = vunpack.c.l.b16 %v2129
  %v2148 = vunpack.c.l.b16 %v2130
  %v2149 = vunpack.c.l.b16 %v2131
  %v2150 = vunpack.c.l.b16 %v2132
  %v2151 = vpack.c.b16 %v2144, %v2143
  %v2152 = vpack.c.b16 %v2146, %v2145
  %v2153 = vpack.c.b16 %v2148, %v2147
  %v2154 = vpack.c.b16 %v2150, %v2149
  %v2156 = vsel %vm72, %v2151, 0
  %v2159 = vsel %vm72, %v2152, 0
  %v2162 = vsel %vm72, %v2153, 0
  %v2165 = vsel %vm72, %v2154, 0
  %v2168 = vsel %vm85, %v2134, 0
  %2170 = vmatprep.subr.bf16.mxu0 0
  %2171 = vmatpush1.bf16.msra.mxu0 0
  %2172 = vmatprep.subr.bf16.mxu0 0
  %2173 = vmatpush1.bf16.msra.mxu0 0
  %2174 = vmatprep.subr.bf16.mxu0 0
  %2175 = vmatpush1.bf16.msra.mxu0 0
  %2176 = vmatprep.subr.bf16.mxu0 0
  %2177 = vmatpush1.bf16.msra.mxu0 0
  %2178 = vmatprep.subr.bf16.mxu0 0
  %2179 = vmatpush1.bf16.msra.mxu0 0
  %2180 = vmatprep.subr.bf16.mxu0 0
  %2181 = vmatpush1.bf16.msra.mxu0 0
  %2182 = vmatprep.subr.bf16.mxu0 0
  %2183 = vmatpush1.bf16.msra.mxu0 0
  %2184 = vmatprep.subr.bf16.mxu0 0
  %2185 = vmatpush1.bf16.msra.mxu0 %v2168
  %2186 = vmatprep.subr.bf16.mxu0 0
  %2187 = vmatpush2.bf16.msra.mxu0 0
  %2188 = vmatprep.subr.bf16.mxu0 0
  %2189 = vmatpush2.bf16.msra.mxu0 0
  %2190 = vmatprep.subr.bf16.mxu0 0
  %2191 = vmatpush2.bf16.msra.mxu0 0
  %2192 = vmatprep.subr.bf16.mxu0 0
  %2193 = vmatpush2.bf16.msra.mxu0 0
  %2194 = vmatprep.subr.bf16.mxu0 0
  %2195 = vmatpush2.bf16.msra.mxu0 0
  %2196 = vmatprep.subr.bf16.mxu0 0
  %2197 = vmatpush2.bf16.msra.mxu0 0
  %2198 = vmatprep.subr.bf16.mxu0 0
  %2199 = vmatpush2.bf16.msra.mxu0 0
  %2200 = vmatprep.subr.bf16.mxu0 0
  %2201 = vmatpush2.bf16.msra.mxu0 0
  %2202 = vmatprep.mubr.bf16.mxu0 0
  %2203 = vmatmul.mubr.bf16.gmra.mxu0 %v2156
  %v2204 = vpop.f32.mrf.mxu0
  %v2205 = vadd.f32 0.0, %v2204
  %v2206 = vpop.f32.mrf.mxu0
  %v2207 = vpop.f32.mrf.mxu0
  %v2208 = vadd.f32 0.0, %v2207
  %v2209 = vpop.f32.mrf.mxu0
  %2210 = vmatprep.mubr.bf16.mxu0 0
  %2211 = vmatmul.mubr.bf16.gmra.mxu0 %v2159
  %v2212 = vpop.f32.mrf.mxu0
  %v2213 = vadd.f32 0.0, %v2212
  %v2214 = vpop.f32.mrf.mxu0
  %v2215 = vpop.f32.mrf.mxu0
  %v2216 = vadd.f32 0.0, %v2215
  %v2217 = vpop.f32.mrf.mxu0
  %2218 = vmatprep.mubr.bf16.mxu0 0
  %2219 = vmatmul.mubr.bf16.gmra.mxu0 %v2162
  %v2220 = vpop.f32.mrf.mxu0
  %v2221 = vadd.f32 0.0, %v2220
  %v2222 = vpop.f32.mrf.mxu0
  %v2223 = vpop.f32.mrf.mxu0
  %v2224 = vadd.f32 0.0, %v2223
  %v2225 = vpop.f32.mrf.mxu0
  %2226 = vmatprep.mubr.bf16.mxu0 0
  %2227 = vmatmul.mubr.bf16.gmra.mxu0 %v2165
  %v2228 = vpop.f32.mrf.mxu0
  %v2229 = vadd.f32 0.0, %v2228
  %v2230 = vpop.f32.mrf.mxu0
  %v2231 = vpop.f32.mrf.mxu0
  %v2232 = vadd.f32 0.0, %v2231
  %v2233 = vpop.f32.mrf.mxu0
  %2234 = vdwg.mxu0
  %v2235 = vadd.f32 %v2114, %v2205
  %v2236 = vadd.f32 %v2115, %v2208
  %v2237 = vadd.f32 %v2116, %v2213
  %v2238 = vadd.f32 %v2117, %v2216
  %v2239 = vadd.f32 %v2118, %v2221
  %v2240 = vadd.f32 %v2119, %v2224
  %v2241 = vadd.f32 %v2120, %v2229
  %v2242 = vadd.f32 %v2121, %v2232
  %s2243 = sadd.s32 %s1420, 54
  %s2244 = smul.addr %s2243, 4
  %s2245 = scalar_lea.vmem %s0, %s2244
  %v2246 = vld [vmem:[%s2245] sm:$0xf]
  %v2247 = vld [vmem:[%s2245 + $0x8] sm:$0xf]
  %v2248 = vld [vmem:[%s2245 + $0x10] sm:$0xf]
  %v2249 = vld [vmem:[%s2245 + $0x18] sm:$0xf]
  %v2250 = vld [vmem:[%s2245 + $0x20] sm:$0xf]
  %v2251 = vld [vmem:[%s2245 + $0x28] sm:$0xf]
  %v2252 = vld [vmem:[%s2245 + $0x30] sm:$0xf]
  %v2253 = vld [vmem:[%s2245 + $0x38] sm:$0xf]
  %s2254 = scalar_lea.vmem %s1, 52
  %v2255 = vld [vmem:[%s2254] sm:$0xf]
  %v2264 = vunpack.c.l.b16 %v2246
  %v2265 = vunpack.c.l.b16 %v2247
  %v2266 = vunpack.c.l.b16 %v2248
  %v2267 = vunpack.c.l.b16 %v2249
  %v2268 = vunpack.c.l.b16 %v2250
  %v2269 = vunpack.c.l.b16 %v2251
  %v2270 = vunpack.c.l.b16 %v2252
  %v2271 = vunpack.c.l.b16 %v2253
  %v2272 = vpack.c.b16 %v2265, %v2264
  %v2273 = vpack.c.b16 %v2267, %v2266
  %v2274 = vpack.c.b16 %v2269, %v2268
  %v2275 = vpack.c.b16 %v2271, %v2270
  %v2277 = vsel %vm72, %v2272, 0
  %v2280 = vsel %vm72, %v2273, 0
  %v2283 = vsel %vm72, %v2274, 0
  %v2286 = vsel %vm72, %v2275, 0
  %v2289 = vsel %vm85, %v2255, 0
  %2291 = vmatprep.subr.bf16.mxu0 0
  %2292 = vmatpush1.bf16.msra.mxu0 0
  %2293 = vmatprep.subr.bf16.mxu0 0
  %2294 = vmatpush1.bf16.msra.mxu0 0
  %2295 = vmatprep.subr.bf16.mxu0 0
  %2296 = vmatpush1.bf16.msra.mxu0 0
  %2297 = vmatprep.subr.bf16.mxu0 0
  %2298 = vmatpush1.bf16.msra.mxu0 0
  %2299 = vmatprep.subr.bf16.mxu0 0
  %2300 = vmatpush1.bf16.msra.mxu0 0
  %2301 = vmatprep.subr.bf16.mxu0 0
  %2302 = vmatpush1.bf16.msra.mxu0 0
  %2303 = vmatprep.subr.bf16.mxu0 0
  %2304 = vmatpush1.bf16.msra.mxu0 0
  %2305 = vmatprep.subr.bf16.mxu0 0
  %2306 = vmatpush1.bf16.msra.mxu0 %v2289
  %2307 = vmatprep.subr.bf16.mxu0 0
  %2308 = vmatpush2.bf16.msra.mxu0 0
  %2309 = vmatprep.subr.bf16.mxu0 0
  %2310 = vmatpush2.bf16.msra.mxu0 0
  %2311 = vmatprep.subr.bf16.mxu0 0
  %2312 = vmatpush2.bf16.msra.mxu0 0
  %2313 = vmatprep.subr.bf16.mxu0 0
  %2314 = vmatpush2.bf16.msra.mxu0 0
  %2315 = vmatprep.subr.bf16.mxu0 0
  %2316 = vmatpush2.bf16.msra.mxu0 0
  %2317 = vmatprep.subr.bf16.mxu0 0
  %2318 = vmatpush2.bf16.msra.mxu0 0
  %2319 = vmatprep.subr.bf16.mxu0 0
  %2320 = vmatpush2.bf16.msra.mxu0 0
  %2321 = vmatprep.subr.bf16.mxu0 0
  %2322 = vmatpush2.bf16.msra.mxu0 0
  %2323 = vmatprep.mubr.bf16.mxu0 0
  %2324 = vmatmul.mubr.bf16.gmra.mxu0 %v2277
  %v2325 = vpop.f32.mrf.mxu0
  %v2326 = vadd.f32 0.0, %v2325
  %v2327 = vpop.f32.mrf.mxu0
  %v2328 = vpop.f32.mrf.mxu0
  %v2329 = vadd.f32 0.0, %v2328
  %v2330 = vpop.f32.mrf.mxu0
  %2331 = vmatprep.mubr.bf16.mxu0 0
  %2332 = vmatmul.mubr.bf16.gmra.mxu0 %v2280
  %v2333 = vpop.f32.mrf.mxu0
  %v2334 = vadd.f32 0.0, %v2333
  %v2335 = vpop.f32.mrf.mxu0
  %v2336 = vpop.f32.mrf.mxu0
  %v2337 = vadd.f32 0.0, %v2336
  %v2338 = vpop.f32.mrf.mxu0
  %2339 = vmatprep.mubr.bf16.mxu0 0
  %2340 = vmatmul.mubr.bf16.gmra.mxu0 %v2283
  %v2341 = vpop.f32.mrf.mxu0
  %v2342 = vadd.f32 0.0, %v2341
  %v2343 = vpop.f32.mrf.mxu0
  %v2344 = vpop.f32.mrf.mxu0
  %v2345 = vadd.f32 0.0, %v2344
  %v2346 = vpop.f32.mrf.mxu0
  %2347 = vmatprep.mubr.bf16.mxu0 0
  %2348 = vmatmul.mubr.bf16.gmra.mxu0 %v2286
  %v2349 = vpop.f32.mrf.mxu0
  %v2350 = vadd.f32 0.0, %v2349
  %v2351 = vpop.f32.mrf.mxu0
  %v2352 = vpop.f32.mrf.mxu0
  %v2353 = vadd.f32 0.0, %v2352
  %v2354 = vpop.f32.mrf.mxu0
  %2355 = vdwg.mxu0
  %v2356 = vadd.f32 %v2235, %v2326
  %v2357 = vadd.f32 %v2236, %v2329
  %v2358 = vadd.f32 %v2237, %v2334
  %v2359 = vadd.f32 %v2238, %v2337
  %v2360 = vadd.f32 %v2239, %v2342
  %v2361 = vadd.f32 %v2240, %v2345
  %v2362 = vadd.f32 %v2241, %v2350
  %v2363 = vadd.f32 %v2242, %v2353
  %v2364 = vld [vmem:[%s2124] sm:$0xf]
  %v2365 = vld [vmem:[%s2124 + $0x4] sm:$0x1]
  %v2366 = vld [vmem:[%s2124 + $0x8] sm:$0xf]
  %v2367 = vld [vmem:[%s2124 + $0xc] sm:$0x1]
  %v2368 = vld [vmem:[%s2124 + $0x10] sm:$0xf]
  %v2369 = vld [vmem:[%s2124 + $0x14] sm:$0x1]
  %v2370 = vld [vmem:[%s2124 + $0x18] sm:$0xf]
  %v2371 = vld [vmem:[%s2124 + $0x1c] sm:$0x1]
  %v2372 = vld [vmem:[%s2124 + $0x20] sm:$0xf]
  %v2373 = vld [vmem:[%s2124 + $0x24] sm:$0x1]
  %v2374 = vld [vmem:[%s2124 + $0x28] sm:$0xf]
  %v2375 = vld [vmem:[%s2124 + $0x2c] sm:$0x1]
  %v2376 = vld [vmem:[%s2124 + $0x30] sm:$0xf]
  %v2377 = vld [vmem:[%s2124 + $0x34] sm:$0x1]
  %v2378 = vld [vmem:[%s2124 + $0x38] sm:$0xf]
  %v2379 = vld [vmem:[%s2124 + $0x3c] sm:$0x1]
  %v2381 = vshrl.u32 %v2364, 16
  %v2383 = vrot.slane %v2381, 4
  %v2384 = vshll.u32 %v2364, 16
  %v2386 = vrot.slane %v2384, 5
  %v2387 = vor.u32 %v2383, %v2386
  %v2388 = vrot.slane %v2387, 4
  %v2390 = vshll.u32 %v2365, 16
  %v2392 = vrot.slane %v2390, 5
  %v2393 = vsel %vm272, %v2388, %v2392
  %v2395 = vshrl.u32 %v2366, 16
  %v2397 = vrot.slane %v2395, 4
  %v2398 = vshll.u32 %v2366, 16
  %v2400 = vrot.slane %v2398, 5
  %v2401 = vor.u32 %v2397, %v2400
  %v2402 = vrot.slane %v2401, 4
  %v2404 = vshll.u32 %v2367, 16
  %v2406 = vrot.slane %v2404, 5
  %v2407 = vsel %vm272, %v2402, %v2406
  %v2409 = vshrl.u32 %v2368, 16
  %v2411 = vrot.slane %v2409, 4
  %v2412 = vshll.u32 %v2368, 16
  %v2414 = vrot.slane %v2412, 5
  %v2415 = vor.u32 %v2411, %v2414
  %v2416 = vrot.slane %v2415, 4
  %v2418 = vshll.u32 %v2369, 16
  %v2420 = vrot.slane %v2418, 5
  %v2421 = vsel %vm272, %v2416, %v2420
  %v2423 = vshrl.u32 %v2370, 16
  %v2425 = vrot.slane %v2423, 4
  %v2426 = vshll.u32 %v2370, 16
  %v2428 = vrot.slane %v2426, 5
  %v2429 = vor.u32 %v2425, %v2428
  %v2430 = vrot.slane %v2429, 4
  %v2432 = vshll.u32 %v2371, 16
  %v2434 = vrot.slane %v2432, 5
  %v2435 = vsel %vm272, %v2430, %v2434
  %v2437 = vshrl.u32 %v2372, 16
  %v2439 = vrot.slane %v2437, 4
  %v2440 = vshll.u32 %v2372, 16
  %v2442 = vrot.slane %v2440, 5
  %v2443 = vor.u32 %v2439, %v2442
  %v2444 = vrot.slane %v2443, 4
  %v2446 = vshll.u32 %v2373, 16
  %v2448 = vrot.slane %v2446, 5
  %v2449 = vsel %vm272, %v2444, %v2448
  %v2451 = vshrl.u32 %v2374, 16
  %v2453 = vrot.slane %v2451, 4
  %v2454 = vshll.u32 %v2374, 16
  %v2456 = vrot.slane %v2454, 5
  %v2457 = vor.u32 %v2453, %v2456
  %v2458 = vrot.slane %v2457, 4
  %v2460 = vshll.u32 %v2375, 16
  %v2462 = vrot.slane %v2460, 5
  %v2463 = vsel %vm272, %v2458, %v2462
  %v2465 = vshrl.u32 %v2376, 16
  %v2467 = vrot.slane %v2465, 4
  %v2468 = vshll.u32 %v2376, 16
  %v2470 = vrot.slane %v2468, 5
  %v2471 = vor.u32 %v2467, %v2470
  %v2472 = vrot.slane %v2471, 4
  %v2474 = vshll.u32 %v2377, 16
  %v2476 = vrot.slane %v2474, 5
  %v2477 = vsel %vm272, %v2472, %v2476
  %v2479 = vshrl.u32 %v2378, 16
  %v2481 = vrot.slane %v2479, 4
  %v2482 = vshll.u32 %v2378, 16
  %v2484 = vrot.slane %v2482, 5
  %v2485 = vor.u32 %v2481, %v2484
  %v2486 = vrot.slane %v2485, 4
  %v2488 = vshll.u32 %v2379, 16
  %v2490 = vrot.slane %v2488, 5
  %v2491 = vsel %vm272, %v2486, %v2490
  %s2492 = scalar_lea.vmem %s1, 56
  %v2493 = vld [vmem:[%s2492] sm:$0xf]
  %v2494 = vunpack.c.l.b16 %v2393
  %v2495 = vunpack.c.l.b16 %v2407
  %v2496 = vunpack.c.l.b16 %v2421
  %v2497 = vunpack.c.l.b16 %v2435
  %v2498 = vunpack.c.l.b16 %v2449
  %v2499 = vunpack.c.l.b16 %v2463
  %v2500 = vunpack.c.l.b16 %v2477
  %v2501 = vunpack.c.l.b16 %v2491
  %v2502 = vpack.c.b16 %v2495, %v2494
  %v2503 = vpack.c.b16 %v2497, %v2496
  %v2504 = vpack.c.b16 %v2499, %v2498
  %v2505 = vpack.c.b16 %v2501, %v2500
  %v2507 = vsel %vm72, %v2502, 0
  %v2510 = vsel %vm72, %v2503, 0
  %v2513 = vsel %vm72, %v2504, 0
  %v2516 = vsel %vm72, %v2505, 0
  %v2519 = vsel %vm85, %v2493, 0
  %2521 = vmatprep.subr.bf16.mxu0 0
  %2522 = vmatpush1.bf16.msra.mxu0 0
  %2523 = vmatprep.subr.bf16.mxu0 0
  %2524 = vmatpush1.bf16.msra.mxu0 0
  %2525 = vmatprep.subr.bf16.mxu0 0
  %2526 = vmatpush1.bf16.msra.mxu0 0
  %2527 = vmatprep.subr.bf16.mxu0 0
  %2528 = vmatpush1.bf16.msra.mxu0 0
  %2529 = vmatprep.subr.bf16.mxu0 0
  %2530 = vmatpush1.bf16.msra.mxu0 0
  %2531 = vmatprep.subr.bf16.mxu0 0
  %2532 = vmatpush1.bf16.msra.mxu0 0
  %2533 = vmatprep.subr.bf16.mxu0 0
  %2534 = vmatpush1.bf16.msra.mxu0 0
  %2535 = vmatprep.subr.bf16.mxu0 0
  %2536 = vmatpush1.bf16.msra.mxu0 %v2519
  %2537 = vmatprep.subr.bf16.mxu0 0
  %2538 = vmatpush2.bf16.msra.mxu0 0
  %2539 = vmatprep.subr.bf16.mxu0 0
  %2540 = vmatpush2.bf16.msra.mxu0 0
  %2541 = vmatprep.subr.bf16.mxu0 0
  %2542 = vmatpush2.bf16.msra.mxu0 0
  %2543 = vmatprep.subr.bf16.mxu0 0
  %2544 = vmatpush2.bf16.msra.mxu0 0
  %2545 = vmatprep.subr.bf16.mxu0 0
  %2546 = vmatpush2.bf16.msra.mxu0 0
  %2547 = vmatprep.subr.bf16.mxu0 0
  %2548 = vmatpush2.bf16.msra.mxu0 0
  %2549 = vmatprep.subr.bf16.mxu0 0
  %2550 = vmatpush2.bf16.msra.mxu0 0
  %2551 = vmatprep.subr.bf16.mxu0 0
  %2552 = vmatpush2.bf16.msra.mxu0 0
  %2553 = vmatprep.mubr.bf16.mxu0 0
  %2554 = vmatmul.mubr.bf16.gmra.mxu0 %v2507
  %v2555 = vpop.f32.mrf.mxu0
  %v2556 = vadd.f32 0.0, %v2555
  %v2557 = vpop.f32.mrf.mxu0
  %v2558 = vpop.f32.mrf.mxu0
  %v2559 = vadd.f32 0.0, %v2558
  %v2560 = vpop.f32.mrf.mxu0
  %2561 = vmatprep.mubr.bf16.mxu0 0
  %2562 = vmatmul.mubr.bf16.gmra.mxu0 %v2510
  %v2563 = vpop.f32.mrf.mxu0
  %v2564 = vadd.f32 0.0, %v2563
  %v2565 = vpop.f32.mrf.mxu0
  %v2566 = vpop.f32.mrf.mxu0
  %v2567 = vadd.f32 0.0, %v2566
  %v2568 = vpop.f32.mrf.mxu0
  %2569 = vmatprep.mubr.bf16.mxu0 0
  %2570 = vmatmul.mubr.bf16.gmra.mxu0 %v2513
  %v2571 = vpop.f32.mrf.mxu0
  %v2572 = vadd.f32 0.0, %v2571
  %v2573 = vpop.f32.mrf.mxu0
  %v2574 = vpop.f32.mrf.mxu0
  %v2575 = vadd.f32 0.0, %v2574
  %v2576 = vpop.f32.mrf.mxu0
  %2577 = vmatprep.mubr.bf16.mxu0 0
  %2578 = vmatmul.mubr.bf16.gmra.mxu0 %v2516
  %v2579 = vpop.f32.mrf.mxu0
  %v2580 = vadd.f32 0.0, %v2579
  %v2581 = vpop.f32.mrf.mxu0
  %v2582 = vpop.f32.mrf.mxu0
  %v2583 = vadd.f32 0.0, %v2582
  %v2584 = vpop.f32.mrf.mxu0
  %2585 = vdwg.mxu0
  %v2586 = vadd.f32 %v2356, %v2556
  %v2587 = vadd.f32 %v2357, %v2559
  %v2588 = vadd.f32 %v2358, %v2564
  %v2589 = vadd.f32 %v2359, %v2567
  %v2590 = vadd.f32 %v2360, %v2572
  %v2591 = vadd.f32 %v2361, %v2575
  %v2592 = vadd.f32 %v2362, %v2580
  %v2593 = vadd.f32 %v2363, %v2583
  %v2594 = vld [vmem:[%s2245] sm:$0xf]
  %v2595 = vld [vmem:[%s2245 + $0x4] sm:$0x1]
  %v2596 = vld [vmem:[%s2245 + $0x8] sm:$0xf]
  %v2597 = vld [vmem:[%s2245 + $0xc] sm:$0x1]
  %v2598 = vld [vmem:[%s2245 + $0x10] sm:$0xf]
  %v2599 = vld [vmem:[%s2245 + $0x14] sm:$0x1]
  %v2600 = vld [vmem:[%s2245 + $0x18] sm:$0xf]
  %v2601 = vld [vmem:[%s2245 + $0x1c] sm:$0x1]
  %v2602 = vld [vmem:[%s2245 + $0x20] sm:$0xf]
  %v2603 = vld [vmem:[%s2245 + $0x24] sm:$0x1]
  %v2604 = vld [vmem:[%s2245 + $0x28] sm:$0xf]
  %v2605 = vld [vmem:[%s2245 + $0x2c] sm:$0x1]
  %v2606 = vld [vmem:[%s2245 + $0x30] sm:$0xf]
  %v2607 = vld [vmem:[%s2245 + $0x34] sm:$0x1]
  %v2608 = vld [vmem:[%s2245 + $0x38] sm:$0xf]
  %v2609 = vld [vmem:[%s2245 + $0x3c] sm:$0x1]
  %v2611 = vshrl.u32 %v2594, 16
  %v2613 = vrot.slane %v2611, 4
  %v2614 = vshll.u32 %v2594, 16
  %v2616 = vrot.slane %v2614, 5
  %v2617 = vor.u32 %v2613, %v2616
  %v2618 = vrot.slane %v2617, 4
  %v2620 = vshll.u32 %v2595, 16
  %v2622 = vrot.slane %v2620, 5
  %v2623 = vsel %vm272, %v2618, %v2622
  %v2625 = vshrl.u32 %v2596, 16
  %v2627 = vrot.slane %v2625, 4
  %v2628 = vshll.u32 %v2596, 16
  %v2630 = vrot.slane %v2628, 5
  %v2631 = vor.u32 %v2627, %v2630
  %v2632 = vrot.slane %v2631, 4
  %v2634 = vshll.u32 %v2597, 16
  %v2636 = vrot.slane %v2634, 5
  %v2637 = vsel %vm272, %v2632, %v2636
  %v2639 = vshrl.u32 %v2598, 16
  %v2641 = vrot.slane %v2639, 4
  %v2642 = vshll.u32 %v2598, 16
  %v2644 = vrot.slane %v2642, 5
  %v2645 = vor.u32 %v2641, %v2644
  %v2646 = vrot.slane %v2645, 4
  %v2648 = vshll.u32 %v2599, 16
  %v2650 = vrot.slane %v2648, 5
  %v2651 = vsel %vm272, %v2646, %v2650
  %v2653 = vshrl.u32 %v2600, 16
  %v2655 = vrot.slane %v2653, 4
  %v2656 = vshll.u32 %v2600, 16
  %v2658 = vrot.slane %v2656, 5
  %v2659 = vor.u32 %v2655, %v2658
  %v2660 = vrot.slane %v2659, 4
  %v2662 = vshll.u32 %v2601, 16
  %v2664 = vrot.slane %v2662, 5
  %v2665 = vsel %vm272, %v2660, %v2664
  %v2667 = vshrl.u32 %v2602, 16
  %v2669 = vrot.slane %v2667, 4
  %v2670 = vshll.u32 %v2602, 16
  %v2672 = vrot.slane %v2670, 5
  %v2673 = vor.u32 %v2669, %v2672
  %v2674 = vrot.slane %v2673, 4
  %v2676 = vshll.u32 %v2603, 16
  %v2678 = vrot.slane %v2676, 5
  %v2679 = vsel %vm272, %v2674, %v2678
  %v2681 = vshrl.u32 %v2604, 16
  %v2683 = vrot.slane %v2681, 4
  %v2684 = vshll.u32 %v2604, 16
  %v2686 = vrot.slane %v2684, 5
  %v2687 = vor.u32 %v2683, %v2686
  %v2688 = vrot.slane %v2687, 4
  %v2690 = vshll.u32 %v2605, 16
  %v2692 = vrot.slane %v2690, 5
  %v2693 = vsel %vm272, %v2688, %v2692
  %v2695 = vshrl.u32 %v2606, 16
  %v2697 = vrot.slane %v2695, 4
  %v2698 = vshll.u32 %v2606, 16
  %v2700 = vrot.slane %v2698, 5
  %v2701 = vor.u32 %v2697, %v2700
  %v2702 = vrot.slane %v2701, 4
  %v2704 = vshll.u32 %v2607, 16
  %v2706 = vrot.slane %v2704, 5
  %v2707 = vsel %vm272, %v2702, %v2706
  %v2709 = vshrl.u32 %v2608, 16
  %v2711 = vrot.slane %v2709, 4
  %v2712 = vshll.u32 %v2608, 16
  %v2714 = vrot.slane %v2712, 5
  %v2715 = vor.u32 %v2711, %v2714
  %v2716 = vrot.slane %v2715, 4
  %v2718 = vshll.u32 %v2609, 16
  %v2720 = vrot.slane %v2718, 5
  %v2721 = vsel %vm272, %v2716, %v2720
  %s2722 = scalar_lea.vmem %s1, 60
  %v2723 = vld [vmem:[%s2722] sm:$0xf]
  %v2724 = vunpack.c.l.b16 %v2623
  %v2725 = vunpack.c.l.b16 %v2637
  %v2726 = vunpack.c.l.b16 %v2651
  %v2727 = vunpack.c.l.b16 %v2665
  %v2728 = vunpack.c.l.b16 %v2679
  %v2729 = vunpack.c.l.b16 %v2693
  %v2730 = vunpack.c.l.b16 %v2707
  %v2731 = vunpack.c.l.b16 %v2721
  %v2732 = vpack.c.b16 %v2725, %v2724
  %v2733 = vpack.c.b16 %v2727, %v2726
  %v2734 = vpack.c.b16 %v2729, %v2728
  %v2735 = vpack.c.b16 %v2731, %v2730
  %v2737 = vsel %vm72, %v2732, 0
  %v2740 = vsel %vm72, %v2733, 0
  %v2743 = vsel %vm72, %v2734, 0
  %v2746 = vsel %vm72, %v2735, 0
  %v2749 = vsel %vm85, %v2723, 0
  %2751 = vmatprep.subr.bf16.mxu0 0
  %2752 = vmatpush1.bf16.msra.mxu0 0
  %2753 = vmatprep.subr.bf16.mxu0 0
  %2754 = vmatpush1.bf16.msra.mxu0 0
  %2755 = vmatprep.subr.bf16.mxu0 0
  %2756 = vmatpush1.bf16.msra.mxu0 0
  %2757 = vmatprep.subr.bf16.mxu0 0
  %2758 = vmatpush1.bf16.msra.mxu0 0
  %2759 = vmatprep.subr.bf16.mxu0 0
  %2760 = vmatpush1.bf16.msra.mxu0 0
  %2761 = vmatprep.subr.bf16.mxu0 0
  %2762 = vmatpush1.bf16.msra.mxu0 0
  %2763 = vmatprep.subr.bf16.mxu0 0
  %2764 = vmatpush1.bf16.msra.mxu0 0
  %2765 = vmatprep.subr.bf16.mxu0 0
  %2766 = vmatpush1.bf16.msra.mxu0 %v2749
  %2767 = vmatprep.subr.bf16.mxu0 0
  %2768 = vmatpush2.bf16.msra.mxu0 0
  %2769 = vmatprep.subr.bf16.mxu0 0
  %2770 = vmatpush2.bf16.msra.mxu0 0
  %2771 = vmatprep.subr.bf16.mxu0 0
  %2772 = vmatpush2.bf16.msra.mxu0 0
  %2773 = vmatprep.subr.bf16.mxu0 0
  %2774 = vmatpush2.bf16.msra.mxu0 0
  %2775 = vmatprep.subr.bf16.mxu0 0
  %2776 = vmatpush2.bf16.msra.mxu0 0
  %2777 = vmatprep.subr.bf16.mxu0 0
  %2778 = vmatpush2.bf16.msra.mxu0 0
  %2779 = vmatprep.subr.bf16.mxu0 0
  %2780 = vmatpush2.bf16.msra.mxu0 0
  %2781 = vmatprep.subr.bf16.mxu0 0
  %2782 = vmatpush2.bf16.msra.mxu0 0
  %2783 = vmatprep.mubr.bf16.mxu0 0
  %2784 = vmatmul.mubr.bf16.gmra.mxu0 %v2737
  %v2785 = vpop.f32.mrf.mxu0
  %v2786 = vadd.f32 0.0, %v2785
  %v2787 = vpop.f32.mrf.mxu0
  %v2788 = vpop.f32.mrf.mxu0
  %v2789 = vadd.f32 0.0, %v2788
  %v2790 = vpop.f32.mrf.mxu0
  %2791 = vmatprep.mubr.bf16.mxu0 0
  %2792 = vmatmul.mubr.bf16.gmra.mxu0 %v2740
  %v2793 = vpop.f32.mrf.mxu0
  %v2794 = vadd.f32 0.0, %v2793
  %v2795 = vpop.f32.mrf.mxu0
  %v2796 = vpop.f32.mrf.mxu0
  %v2797 = vadd.f32 0.0, %v2796
  %v2798 = vpop.f32.mrf.mxu0
  %2799 = vmatprep.mubr.bf16.mxu0 0
  %2800 = vmatmul.mubr.bf16.gmra.mxu0 %v2743
  %v2801 = vpop.f32.mrf.mxu0
  %v2802 = vadd.f32 0.0, %v2801
  %v2803 = vpop.f32.mrf.mxu0
  %v2804 = vpop.f32.mrf.mxu0
  %v2805 = vadd.f32 0.0, %v2804
  %v2806 = vpop.f32.mrf.mxu0
  %2807 = vmatprep.mubr.bf16.mxu0 0
  %2808 = vmatmul.mubr.bf16.gmra.mxu0 %v2746
  %v2809 = vpop.f32.mrf.mxu0
  %v2810 = vadd.f32 0.0, %v2809
  %v2811 = vpop.f32.mrf.mxu0
  %v2812 = vpop.f32.mrf.mxu0
  %v2813 = vadd.f32 0.0, %v2812
  %v2814 = vpop.f32.mrf.mxu0
  %2815 = vdwg.mxu0
  %v2816 = vadd.f32 %v2586, %v2786
  %v2817 = vadd.f32 %v2587, %v2789
  %v2818 = vadd.f32 %v2588, %v2794
  %v2819 = vadd.f32 %v2589, %v2797
  %v2820 = vadd.f32 %v2590, %v2802
  %v2821 = vadd.f32 %v2591, %v2805
  %v2822 = vadd.f32 %v2592, %v2810
  %v2823 = vadd.f32 %v2593, %v2813
  %vm2824 = vcmask 130048
  %2825 = vst.msk [vmem:[%s22] sm:$0xff] %vm2824, %v2816
  %2826 = vst.msk [vmem:[%s22 + $0x8] sm:$0xff] %vm2824, %v2817
  %2827 = vst.msk [vmem:[%s22 + $0x10] sm:$0xff] %vm2824, %v2818
  %2828 = vst.msk [vmem:[%s22 + $0x18] sm:$0xff] %vm2824, %v2819
  %2829 = vst.msk [vmem:[%s22 + $0x20] sm:$0xff] %vm2824, %v2820
  %2830 = vst.msk [vmem:[%s22 + $0x28] sm:$0xff] %vm2824, %v2821
  %2831 = vst.msk [vmem:[%s22 + $0x30] sm:$0xff] %vm2824, %v2822
  %2832 = vst.msk [vmem:[%s22 + $0x38] sm:$0xff] %vm2824, %v2823
  %s2833 = sadd.s32 0, 0
  %s2834 = smul.u32 8, %s2833
  %p2835 = scmp.lt.s32.totalorder %s2834, 7
  %s2836 = scalar_select %p2835, %s2834, 7
  %s2837 = smul.addr %s2836, 8
  %s2838 = scalar_lea.vmem %s2, %s2837
  // Predicated region
  $region10: #{tpu_custom_call.1} parent=0 // pred_check
    _
  $region11: #{tpu_custom_call.1} parent=0 // pred_check_branch
    %2840 = sbr.rel (0) target = $region13
  $region12: #{tpu_custom_call.1} parent=0 // pred_region
    %s2841 = sadd.s32 0, 0
    %s2842 = smul.u32 8, %s2841
  $region13: #{tpu_custom_call.1} parent=0 // pred_fallthru
    _
  // Predicated region
  $region14: #{tpu_custom_call.1} parent=0 // pred_check
    _
  $region15: #{tpu_custom_call.1} parent=0 // pred_check_branch
    %2844 = sbr.rel (0) target = $region17
  $region16: #{tpu_custom_call.1} parent=0 // pred_region
    %s2845 = sadd.s32 0, 0
    %s2846 = smul.u32 8, %s2845
    %p2847 = scmp.lt.s32.totalorder %s2846, 7
    %s2848 = scalar_select %p2847, %s2846, 7
    %s2849 = smul.addr %s2848, 8
    %s2850 = scalar_lea.vmem %s2, %s2849
  $region17: #{tpu_custom_call.1} parent=0 // pred_fallthru
    _

</llo_original>
